<compile_context>
chip_gen: v6e
topology: v6e:2x2x1
jax: 0.10.0
libtpu: 0.0.40
codegen_flags: <defaults>
</compile_context>

<pallas_src>
import math

import jax
import jax.numpy as jnp
import numpy as np
from jax import lax
from jax.experimental import pallas as pl
from jax.experimental.pallas import tpu as pltpu


def _round_up(x, m):
    return (x + m - 1) // m * m


def _down_conv3x3_kernel(x_ref, w_ref, b_ref, o_ref):
    """3x3 'same' conv over one (space-to-depth'd, zero-padded) NHWC image.

    x_ref: (1, Ho+2, Wo+2, Cin_pad)  padded activations (compute dtype)
    w_ref: (9, Cin_pad, TCO)         folded weights, tap index = kh*3 + kw
    b_ref: (1, TCO)                  bias (f32)
    o_ref: (1, Ho, Wo, TCO)          output tile (lane-dense: TCO % 128 == 0)
    """
    _, hp, wp, cin = x_ref.shape
    ho, wo = hp - 2, wp - 2
    tco = o_ref.shape[-1]

    acc = jnp.zeros((ho * wo, tco), jnp.float32)
    for kh in range(3):                       # statically unrolled 9 taps
        for kw in range(3):
            patch = x_ref[0, pl.ds(kh, ho), pl.ds(kw, wo), :]
            patch = patch.reshape(ho * wo, cin)
            acc += jnp.dot(patch, w_ref[kh * 3 + kw],
                           preferred_element_type=jnp.float32)
    acc = acc + b_ref[...]
    o_ref[0] = acc.reshape(ho, wo, tco).astype(o_ref.dtype)


def space_to_depth_nhwc(x):
    """'b c (h p1) (w p2) -> b h w (c p1 p2)', p1=p2=2, in one transpose."""
    B, C, H, W = x.shape
    Ho, Wo = H // 2, W // 2
    x = x.reshape(B, C, Ho, 2, Wo, 2)            # b c h p1 w p2
    x = jnp.transpose(x, (0, 2, 4, 1, 3, 5))     # b h w c p1 p2
    return x.reshape(B, Ho, Wo, C * 4)           # channel = c*4 + p1*2 + p2


def down_block_pallas(x, weight, bias, *, compute_dtype=jnp.bfloat16):
    """x: (B, C, H, W) NCHW.  weight: (Cout, 4*C, 3, 3) OIHW.  bias: (Cout,)."""
    B, C, H, W = x.shape
    assert H % 2 == 0 and W % 2 == 0, "spatial dims must be even"
    Cout, Cin_w, KH, KW = weight.shape
    Cin = 4 * C
    assert (Cin_w, KH, KW) == (Cin, 3, 3), (Cin_w, KH, KW)
    Ho, Wo = H // 2, W // 2
    Hp, Wp = Ho + 2, Wo + 2

    Cin_pad = _round_up(Cin, 128)
    Cout_pad = _round_up(Cout, 128)
    TCO = 256 if Cout_pad % 256 == 0 else 128    # 256-wide MXU on v6e/v7x
    NCO = Cout_pad // TCO

    # ---- layout plumbing (single fused transpose + pad + cast in XLA) ----
    x_nhwc = space_to_depth_nhwc(x).astype(compute_dtype)       # (B,Ho,Wo,Cin)
    x_pad = jnp.pad(x_nhwc, ((0, 0), (1, 1), (1, 1), (0, Cin_pad - Cin)))

    # (Cout, Cin, 3, 3) -> (kh, kw, cin, cout) -> (9, Cin_pad, Cout_pad)
    w_taps = jnp.transpose(weight, (2, 3, 1, 0)).reshape(9, Cin, Cout)
    w_taps = jnp.pad(w_taps,
                     ((0, 0), (0, Cin_pad - Cin), (0, Cout_pad - Cout)))
    w_taps = w_taps.astype(compute_dtype)
    b2d = jnp.pad(bias.astype(jnp.float32).reshape(1, Cout),
                  ((0, 0), (0, Cout_pad - Cout)))

    out_dtype = x.dtype
    cdt = jnp.dtype(compute_dtype).itemsize
    odt = jnp.dtype(out_dtype).itemsize

    # VMEM footprint (double-buffered streams) -> scoped limit, <= v7x 64 MiB.
    est = (2 * Hp * Wp * Cin_pad * cdt
           + 2 * 9 * Cin_pad * TCO * cdt
           + 2 * TCO * 4
           + 2 * Ho * Wo * TCO * odt)
    vmem_limit = int(min(max(2 * est, 32 * 1024 * 1024), 64 * 1024 * 1024))

    flops = 2 * B * Ho * Wo * 9 * Cin_pad * Cout_pad
    bytes_accessed = int(x_pad.size * cdt + w_taps.size * cdt + b2d.size * 4
                         + B * Ho * Wo * Cout_pad * odt)

    out_full = pl.pallas_call(
        _down_conv3x3_kernel,
        out_shape=jax.ShapeDtypeStruct((B, Ho, Wo, Cout_pad), out_dtype),
        grid=(B, NCO),
        in_specs=[
            pl.BlockSpec((1, Hp, Wp, Cin_pad), lambda b, j: (b, 0, 0, 0)),
            pl.BlockSpec((9, Cin_pad, TCO), lambda b, j: (0, 0, j)),
            pl.BlockSpec((1, TCO), lambda b, j: (0, j)),
        ],
        out_specs=pl.BlockSpec((1, Ho, Wo, TCO), lambda b, j: (b, 0, 0, j)),
        compiler_params=pltpu.CompilerParams(
            dimension_semantics=("parallel", "parallel"),
            vmem_limit_bytes=vmem_limit),
        cost_estimate=pl.CostEstimate(
            flops=flops, transcendentals=0, bytes_accessed=bytes_accessed),
    )(x_pad, w_taps, b2d)

    out = out_full[..., :Cout]                   # strip Cout padding
    return jnp.transpose(out, (0, 3, 1, 2))      # NHWC -> NCHW (PyTorch layout)


def down_block_reference(x, weight, bias):
    """Pure-JAX reference (lax conv) for correctness checking."""
    xr = jnp.transpose(space_to_depth_nhwc(x), (0, 3, 1, 2))     # NCHW, 4C chans
    out = lax.conv_general_dilated(
        xr, weight, window_strides=(1, 1), padding=((1, 1), (1, 1)),
        dimension_numbers=("NCHW", "OIHW", "NCHW"),
        precision=lax.Precision.HIGHEST)
    return out + bias[None, :, None, None]


if __name__ == "__main__":
    # Small shapes consistent with the module.
    B, C_in, H, W = 2, 4, 16, 16
    C_out = 8

    key = jax.random.PRNGKey(0)
    kx, kw, kb = jax.random.split(key, 3)

    x = jax.random.normal(kx, (B, C_in, H, W), dtype=jnp.float32)

    # Deterministic init mimicking nn.Conv2d defaults (uniform +/- 1/sqrt(fan_in)).
    fan_in = (C_in * 4) * 3 * 3
    bound = 1.0 / math.sqrt(fan_in)
    weight = jax.random.uniform(kw, (C_out, C_in * 4, 3, 3),
                                minval=-bound, maxval=bound, dtype=jnp.float32)
    bias = jax.random.uniform(kb, (C_out,), minval=-bound, maxval=bound,
                              dtype=jnp.float32)

    ref = jax.block_until_ready(down_block_reference(x, weight, bias))

    # f32 compute path — tight numerical check.
    out_f32 = jax.block_until_ready(
        down_block_pallas(x, weight, bias, compute_dtype=jnp.float32))
    assert out_f32.shape == (B, C_out, H // 2, W // 2), out_f32.shape
    np.testing.assert_allclose(np.asarray(out_f32), np.asarray(ref),
                               rtol=1e-4, atol=1e-4)

    # Default bf16 streaming path (the performance configuration).
    out_bf16 = jax.block_until_ready(down_block_pallas(x, weight, bias))
    assert out_bf16.shape == (B, C_out, H // 2, W // 2), out_bf16.shape
    np.testing.assert_allclose(np.asarray(out_bf16), np.asarray(ref),
                               rtol=5e-2, atol=5e-2)

    print("KERNEL_OK")
</pallas_src>

<mosaic_0001>
module attributes {stable_mosaic.version = 11 : i64} {
  func.func @_down_conv3x3_kernel(%arg0: i32, %arg1: i32, %arg2: memref<1x10x10x128xf32, #tpu.memory_space<vmem>>, %arg3: memref<9x128x128xf32, #tpu.memory_space<vmem>>, %arg4: memref<1x128xf32, #tpu.memory_space<vmem>>, %arg5: memref<1x8x8x128xf32, #tpu.memory_space<vmem>>) attributes {dimension_semantics = [#tpu.dimension_semantics<parallel>, #tpu.dimension_semantics<parallel>], iteration_bounds = array<i64: 2, 1>, scalar_prefetch = 0 : i64, scratch_operands = 0 : i64, tpu.core_type = #tpu.core_type<tc>, window_params = [{transform_indices = @transform_0, window_bounds = array<i64: 1, 10, 10, 128>}, {transform_indices = @transform_1, window_bounds = array<i64: 9, 128, 128>}, {transform_indices = @transform_2, window_bounds = array<i64: 1, 128>}, {transform_indices = @transform_3, window_bounds = array<i64: 1, 8, 8, 128>}]} {
    %cst = arith.constant 0.000000e+00 : f32
    %0 = vector.broadcast %cst : f32 to vector<64x128xf32>
    %c0 = arith.constant 0 : index
    %c0_0 = arith.constant 0 : index
    %c0_1 = arith.constant 0 : index
    %c0_2 = arith.constant 0 : index
    %1 = vector.load %arg2[%c0, %c0_0, %c0_1, %c0_2] : memref<1x10x10x128xf32, #tpu.memory_space<vmem>>, vector<1x8x8x128xf32>
    %2 = vector.shape_cast %1 : vector<1x8x8x128xf32> to vector<8x8x128xf32>
    %3 = vector.shape_cast %2 : vector<8x8x128xf32> to vector<64x128xf32>
    %c0_3 = arith.constant 0 : index
    %c0_4 = arith.constant 0 : index
    %c0_5 = arith.constant 0 : index
    %4 = vector.load %arg3[%c0_3, %c0_4, %c0_5] : memref<9x128x128xf32, #tpu.memory_space<vmem>>, vector<1x128x128xf32>
    %5 = vector.shape_cast %4 : vector<1x128x128xf32> to vector<128x128xf32>
    %cst_6 = arith.constant dense<0.000000e+00> : vector<64x128xf32>
    %6 = tpu.matmul %3, %5, %cst_6 {dimension_numbers = #tpu.dot_dimension_numbers<[1], [0], [0], [1], [0, 0, 1, 1], [], []>} : vector<64x128xf32>, vector<128x128xf32>, vector<64x128xf32> -> vector<64x128xf32>
    %7 = arith.addf %0, %6 : vector<64x128xf32>
    %c0_7 = arith.constant 0 : index
    %c0_8 = arith.constant 0 : index
    %c1 = arith.constant 1 : index
    %c0_9 = arith.constant 0 : index
    %8 = vector.load %arg2[%c0_7, %c0_8, %c1, %c0_9] : memref<1x10x10x128xf32, #tpu.memory_space<vmem>>, vector<1x8x8x128xf32>
    %9 = vector.shape_cast %8 : vector<1x8x8x128xf32> to vector<8x8x128xf32>
    %10 = vector.shape_cast %9 : vector<8x8x128xf32> to vector<64x128xf32>
    %c1_10 = arith.constant 1 : index
    %c0_11 = arith.constant 0 : index
    %c0_12 = arith.constant 0 : index
    %11 = vector.load %arg3[%c1_10, %c0_11, %c0_12] : memref<9x128x128xf32, #tpu.memory_space<vmem>>, vector<1x128x128xf32>
    %12 = vector.shape_cast %11 : vector<1x128x128xf32> to vector<128x128xf32>
    %cst_13 = arith.constant dense<0.000000e+00> : vector<64x128xf32>
    %13 = tpu.matmul %10, %12, %cst_13 {dimension_numbers = #tpu.dot_dimension_numbers<[1], [0], [0], [1], [0, 0, 1, 1], [], []>} : vector<64x128xf32>, vector<128x128xf32>, vector<64x128xf32> -> vector<64x128xf32>
    %14 = arith.addf %7, %13 : vector<64x128xf32>
    %c0_14 = arith.constant 0 : index
    %c0_15 = arith.constant 0 : index
    %c2 = arith.constant 2 : index
    %c0_16 = arith.constant 0 : index
    %15 = vector.load %arg2[%c0_14, %c0_15, %c2, %c0_16] : memref<1x10x10x128xf32, #tpu.memory_space<vmem>>, vector<1x8x8x128xf32>
    %16 = vector.shape_cast %15 : vector<1x8x8x128xf32> to vector<8x8x128xf32>
    %17 = vector.shape_cast %16 : vector<8x8x128xf32> to vector<64x128xf32>
    %c2_17 = arith.constant 2 : index
    %c0_18 = arith.constant 0 : index
    %c0_19 = arith.constant 0 : index
    %18 = vector.load %arg3[%c2_17, %c0_18, %c0_19] : memref<9x128x128xf32, #tpu.memory_space<vmem>>, vector<1x128x128xf32>
    %19 = vector.shape_cast %18 : vector<1x128x128xf32> to vector<128x128xf32>
    %cst_20 = arith.constant dense<0.000000e+00> : vector<64x128xf32>
    %20 = tpu.matmul %17, %19, %cst_20 {dimension_numbers = #tpu.dot_dimension_numbers<[1], [0], [0], [1], [0, 0, 1, 1], [], []>} : vector<64x128xf32>, vector<128x128xf32>, vector<64x128xf32> -> vector<64x128xf32>
    %21 = arith.addf %14, %20 : vector<64x128xf32>
    %c0_21 = arith.constant 0 : index
    %c1_22 = arith.constant 1 : index
    %c0_23 = arith.constant 0 : index
    %c0_24 = arith.constant 0 : index
    %22 = vector.load %arg2[%c0_21, %c1_22, %c0_23, %c0_24] : memref<1x10x10x128xf32, #tpu.memory_space<vmem>>, vector<1x8x8x128xf32>
    %23 = vector.shape_cast %22 : vector<1x8x8x128xf32> to vector<8x8x128xf32>
    %24 = vector.shape_cast %23 : vector<8x8x128xf32> to vector<64x128xf32>
    %c3 = arith.constant 3 : index
    %c0_25 = arith.constant 0 : index
    %c0_26 = arith.constant 0 : index
    %25 = vector.load %arg3[%c3, %c0_25, %c0_26] : memref<9x128x128xf32, #tpu.memory_space<vmem>>, vector<1x128x128xf32>
    %26 = vector.shape_cast %25 : vector<1x128x128xf32> to vector<128x128xf32>
    %cst_27 = arith.constant dense<0.000000e+00> : vector<64x128xf32>
    %27 = tpu.matmul %24, %26, %cst_27 {dimension_numbers = #tpu.dot_dimension_numbers<[1], [0], [0], [1], [0, 0, 1, 1], [], []>} : vector<64x128xf32>, vector<128x128xf32>, vector<64x128xf32> -> vector<64x128xf32>
    %28 = arith.addf %21, %27 : vector<64x128xf32>
    %c0_28 = arith.constant 0 : index
    %c1_29 = arith.constant 1 : index
    %c1_30 = arith.constant 1 : index
    %c0_31 = arith.constant 0 : index
    %29 = vector.load %arg2[%c0_28, %c1_29, %c1_30, %c0_31] : memref<1x10x10x128xf32, #tpu.memory_space<vmem>>, vector<1x8x8x128xf32>
    %30 = vector.shape_cast %29 : vector<1x8x8x128xf32> to vector<8x8x128xf32>
    %31 = vector.shape_cast %30 : vector<8x8x128xf32> to vector<64x128xf32>
    %c4 = arith.constant 4 : index
    %c0_32 = arith.constant 0 : index
    %c0_33 = arith.constant 0 : index
    %32 = vector.load %arg3[%c4, %c0_32, %c0_33] : memref<9x128x128xf32, #tpu.memory_space<vmem>>, vector<1x128x128xf32>
    %33 = vector.shape_cast %32 : vector<1x128x128xf32> to vector<128x128xf32>
    %cst_34 = arith.constant dense<0.000000e+00> : vector<64x128xf32>
    %34 = tpu.matmul %31, %33, %cst_34 {dimension_numbers = #tpu.dot_dimension_numbers<[1], [0], [0], [1], [0, 0, 1, 1], [], []>} : vector<64x128xf32>, vector<128x128xf32>, vector<64x128xf32> -> vector<64x128xf32>
    %35 = arith.addf %28, %34 : vector<64x128xf32>
    %c0_35 = arith.constant 0 : index
    %c1_36 = arith.constant 1 : index
    %c2_37 = arith.constant 2 : index
    %c0_38 = arith.constant 0 : index
    %36 = vector.load %arg2[%c0_35, %c1_36, %c2_37, %c0_38] : memref<1x10x10x128xf32, #tpu.memory_space<vmem>>, vector<1x8x8x128xf32>
    %37 = vector.shape_cast %36 : vector<1x8x8x128xf32> to vector<8x8x128xf32>
    %38 = vector.shape_cast %37 : vector<8x8x128xf32> to vector<64x128xf32>
    %c5 = arith.constant 5 : index
    %c0_39 = arith.constant 0 : index
    %c0_40 = arith.constant 0 : index
    %39 = vector.load %arg3[%c5, %c0_39, %c0_40] : memref<9x128x128xf32, #tpu.memory_space<vmem>>, vector<1x128x128xf32>
    %40 = vector.shape_cast %39 : vector<1x128x128xf32> to vector<128x128xf32>
    %cst_41 = arith.constant dense<0.000000e+00> : vector<64x128xf32>
    %41 = tpu.matmul %38, %40, %cst_41 {dimension_numbers = #tpu.dot_dimension_numbers<[1], [0], [0], [1], [0, 0, 1, 1], [], []>} : vector<64x128xf32>, vector<128x128xf32>, vector<64x128xf32> -> vector<64x128xf32>
    %42 = arith.addf %35, %41 : vector<64x128xf32>
    %c0_42 = arith.constant 0 : index
    %c2_43 = arith.constant 2 : index
    %c0_44 = arith.constant 0 : index
    %c0_45 = arith.constant 0 : index
    %43 = vector.load %arg2[%c0_42, %c2_43, %c0_44, %c0_45] : memref<1x10x10x128xf32, #tpu.memory_space<vmem>>, vector<1x8x8x128xf32>
    %44 = vector.shape_cast %43 : vector<1x8x8x128xf32> to vector<8x8x128xf32>
    %45 = vector.shape_cast %44 : vector<8x8x128xf32> to vector<64x128xf32>
    %c6 = arith.constant 6 : index
    %c0_46 = arith.constant 0 : index
    %c0_47 = arith.constant 0 : index
    %46 = vector.load %arg3[%c6, %c0_46, %c0_47] : memref<9x128x128xf32, #tpu.memory_space<vmem>>, vector<1x128x128xf32>
    %47 = vector.shape_cast %46 : vector<1x128x128xf32> to vector<128x128xf32>
    %cst_48 = arith.constant dense<0.000000e+00> : vector<64x128xf32>
    %48 = tpu.matmul %45, %47, %cst_48 {dimension_numbers = #tpu.dot_dimension_numbers<[1], [0], [0], [1], [0, 0, 1, 1], [], []>} : vector<64x128xf32>, vector<128x128xf32>, vector<64x128xf32> -> vector<64x128xf32>
    %49 = arith.addf %42, %48 : vector<64x128xf32>
    %c0_49 = arith.constant 0 : index
    %c2_50 = arith.constant 2 : index
    %c1_51 = arith.constant 1 : index
    %c0_52 = arith.constant 0 : index
    %50 = vector.load %arg2[%c0_49, %c2_50, %c1_51, %c0_52] : memref<1x10x10x128xf32, #tpu.memory_space<vmem>>, vector<1x8x8x128xf32>
    %51 = vector.shape_cast %50 : vector<1x8x8x128xf32> to vector<8x8x128xf32>
    %52 = vector.shape_cast %51 : vector<8x8x128xf32> to vector<64x128xf32>
    %c7 = arith.constant 7 : index
    %c0_53 = arith.constant 0 : index
    %c0_54 = arith.constant 0 : index
    %53 = vector.load %arg3[%c7, %c0_53, %c0_54] : memref<9x128x128xf32, #tpu.memory_space<vmem>>, vector<1x128x128xf32>
    %54 = vector.shape_cast %53 : vector<1x128x128xf32> to vector<128x128xf32>
    %cst_55 = arith.constant dense<0.000000e+00> : vector<64x128xf32>
    %55 = tpu.matmul %52, %54, %cst_55 {dimension_numbers = #tpu.dot_dimension_numbers<[1], [0], [0], [1], [0, 0, 1, 1], [], []>} : vector<64x128xf32>, vector<128x128xf32>, vector<64x128xf32> -> vector<64x128xf32>
    %56 = arith.addf %49, %55 : vector<64x128xf32>
    %c0_56 = arith.constant 0 : index
    %c2_57 = arith.constant 2 : index
    %c2_58 = arith.constant 2 : index
    %c0_59 = arith.constant 0 : index
    %57 = vector.load %arg2[%c0_56, %c2_57, %c2_58, %c0_59] : memref<1x10x10x128xf32, #tpu.memory_space<vmem>>, vector<1x8x8x128xf32>
    %58 = vector.shape_cast %57 : vector<1x8x8x128xf32> to vector<8x8x128xf32>
    %59 = vector.shape_cast %58 : vector<8x8x128xf32> to vector<64x128xf32>
    %c8 = arith.constant 8 : index
    %c0_60 = arith.constant 0 : index
    %c0_61 = arith.constant 0 : index
    %60 = vector.load %arg3[%c8, %c0_60, %c0_61] : memref<9x128x128xf32, #tpu.memory_space<vmem>>, vector<1x128x128xf32>
    %61 = vector.shape_cast %60 : vector<1x128x128xf32> to vector<128x128xf32>
    %cst_62 = arith.constant dense<0.000000e+00> : vector<64x128xf32>
    %62 = tpu.matmul %59, %61, %cst_62 {dimension_numbers = #tpu.dot_dimension_numbers<[1], [0], [0], [1], [0, 0, 1, 1], [], []>} : vector<64x128xf32>, vector<128x128xf32>, vector<64x128xf32> -> vector<64x128xf32>
    %63 = arith.addf %56, %62 : vector<64x128xf32>
    %c0_63 = arith.constant 0 : index
    %c0_64 = arith.constant 0 : index
    %64 = vector.load %arg4[%c0_63, %c0_64] : memref<1x128xf32, #tpu.memory_space<vmem>>, vector<1x128xf32>
    %65 = vector.broadcast %64 : vector<1x128xf32> to vector<64x128xf32>
    %66 = arith.addf %63, %65 : vector<64x128xf32>
    %67 = vector.shape_cast %66 : vector<64x128xf32> to vector<8x8x128xf32>
    %c0_65 = arith.constant 0 : index
    %c0_66 = arith.constant 0 : index
    %c0_67 = arith.constant 0 : index
    %c0_68 = arith.constant 0 : index
    %68 = vector.load %arg5[%c0_65, %c0_66, %c0_67, %c0_68] : memref<1x8x8x128xf32, #tpu.memory_space<vmem>>, vector<1x8x8x128xf32>
    %69 = vector.shape_cast %68 : vector<1x8x8x128xf32> to vector<8x8x128xf32>
    %70 = vector.shape_cast %67 : vector<8x8x128xf32> to vector<1x8x8x128xf32>
    tpu.vector_store %arg5[%c0_65, %c0_66, %c0_67, %c0_68], %70 {strides = array<i32>} : memref<1x8x8x128xf32, #tpu.memory_space<vmem>>, vector<1x8x8x128xf32>,
    return
  }
  func.func @transform_0(%arg0: i32, %arg1: i32) -> (i32, i32, i32, i32) {
    %c0_i32 = arith.constant 0 : i32
    %c0_i32_0 = arith.constant 0 : i32
    %c0_i32_1 = arith.constant 0 : i32
    %c0_i32_2 = arith.constant 0 : i32
    return %arg0, %c0_i32, %c0_i32_0, %c0_i32_1 : i32, i32, i32, i32
  }
  func.func @transform_1(%arg0: i32, %arg1: i32) -> (i32, i32, i32) {
    %c0_i32 = arith.constant 0 : i32
    %c0_i32_0 = arith.constant 0 : i32
    %c0_i32_1 = arith.constant 0 : i32
    return %c0_i32, %c0_i32_0, %arg1 : i32, i32, i32
  }
  func.func @transform_2(%arg0: i32, %arg1: i32) -> (i32, i32) {
    %c0_i32 = arith.constant 0 : i32
    %c0_i32_0 = arith.constant 0 : i32
    return %c0_i32, %arg1 : i32, i32
  }
  func.func @transform_3(%arg0: i32, %arg1: i32) -> (i32, i32, i32, i32) {
    %c0_i32 = arith.constant 0 : i32
    %c0_i32_0 = arith.constant 0 : i32
    %c0_i32_1 = arith.constant 0 : i32
    return %arg0, %c0_i32, %c0_i32_0, %arg1 : i32, i32, i32, i32
  }
}

</mosaic_0001>

<llo_original>
// kernel: tpu_custom_call.1
$region0: #{tpu_custom_call.1}
  #allocation0 [shape = 'u32[]', space=smem, size = 0x4, offset = 0x4, fixed_abs, tag = 'smem constant byte address 0x4 - core index']
  #allocation1 [shape = 'u32[144,128]{1,0:T(1,128)}', space=vmem, size = 0x12000, scoped, tag = 'internal scratch']
  %s0 = inlined_call_operand.vmem [shape: f32[2,10,10,128], index: 0, kind: input, shape index: {}]
  %s1 = inlined_call_operand.hbm [shape: f32[9,128,128], index: 1, kind: input, shape index: {}]
  %s2 = inlined_call_operand.vmem [shape: f32[1,128], index: 2, kind: input, shape index: {}]
  %s3 = inlined_call_operand.hbm [shape: f32[2,8,8,128], index: 3, kind: output, shape index: {}]
  %s4 = sld [smem:[#allocation0]]
  $region49: #{tpu_custom_call.1} parent=0
    _
  %s6 = ssub.s32 1, %s4
  %s7 = scalar_select 0, %s6, %s4
  $region1: #{tpu_custom_call.1} parent=0
    #allocation2 [shape = 'u8[589824]{0}', space=vmem, size = 0x90000, scoped, tag = 'input window, operand 1, single buffered']
    #allocation3 [shape = 's32[2]{0}', space=sflag, size = 0x8, scoped, tag = 'scoped memory for tpu_custom_call.1']
    #allocation4 [shape = 's32[2]{0}', space=sflag, size = 0x8, scoped, tag = 'scoped memory for tpu_custom_call.1']
    #allocation5 [shape = 'u8[65536]{0}', space=vmem, size = 0x10000, scoped, tag = 'output window, operand 0']
    %8 = vsyncpa [#allocation3], 0
    %9 = vsyncpa [#allocation4], 0
    %s10 = scalar_lea.sflag [#allocation4], 1
    %11 = vsyncpa %s10, 0
    loop: start=0, step=1, limit=4
    $region2: #{tpu_custom_call.1} parent=1 // loop_pre_header
      _
    $region3: #{tpu_custom_call.1} parent=1 // loop_header
      %s13 = sphi 0, %s17
      %p14 = scmp.ge.s32.totalorder %s13, 4
      %s20 = sphi 0, %s32
      %s21 = sphi 0, %s28
      %s22 = sphi 0, %s20
      %s23 = sphi 0, %s21
      %s24 = sphi 0, %s22
      %s25 = sphi 0, %s23
      %s35 = sphi 0, %s37
      %s38 = sphi 0, %s35
      %s39 = sphi 0, %s38
      %s55 = sphi 0, %s39
      %s61 = sphi 0, %s63
      %s64 = sphi 0, %s61
      %s65 = sphi 0, %s64
      %s81 = sphi 0, %s65
      %s87 = sphi 0, %s89
      %s90 = sphi 0, %s87
      %s91 = sphi 0, %s90
      %s107 = sphi 0, %s91
      %s115 = sphi 0, %s117
      %s118 = sphi 0, %s115
      %s119 = sphi 0, %s118
      %s135 = sphi 0, %s119
    $region4: #{tpu_custom_call.1} parent=1 // loop_header_branch
      %16 = sbr.rel (%p14) target = $region8
    $region5: #{tpu_custom_call.1} parent=1 // loop_body
      %s18 = ssub.s32 %s13, 1
      %s19 = ssub.s32 %s13, 2
      %s26 = sadd.s32 1, %s21
      %p27 = scmp.ge.s32.totalorder %s26, 1
      %s28 = scalar_select %p27, 0, %s26
      %s29 = sadd.s32 1, %s20
      %s30 = scalar_select %p27, %s29, %s20
      %p31 = scmp.ge.s32.totalorder %s30, 2
      %s32 = scalar_select %p31, 0, %s30
      %s33 = ssub.s32 %s20, %s32
      %p34 = scmp.eq.s32.totalorder %s33, 0
      %s36 = sadd.s32 %s35, 1
      %s37 = scalar_select %p34, %s35, %s36
      %p40 = pneg %p34
      %p41 = scmp.eq.s32.totalorder %s13, 1
      %p42 = por %p40, %p41
      %p43 = scmp.ne.s32.totalorder %s35, %s38
      %p44 = scmp.eq.s32.totalorder %s13, 0
      %p45 = por %p43, %p44
      %p46 = scmp.ne.s32.totalorder %s35, %s38
      %p47 = scmp.eq.s32.totalorder %s18, 1
      %p48 = por %p46, %p47
      %p49 = scmp.ne.s32.totalorder %s38, %s39
      %p50 = scmp.eq.s32.totalorder %s18, 0
      %p51 = por %p49, %p50
      %p52 = scmp.ne.s32.totalorder %s38, %s39
      %p53 = scmp.eq.s32.totalorder %s19, 1
      %p54 = por %p52, %p53
      %p56 = scmp.ne.s32.totalorder %s39, %s55
      %p57 = scmp.eq.s32.totalorder %s19, 0
      %p58 = por %p56, %p57
      %s59 = ssub.s32 %s21, %s28
      %p60 = scmp.eq.s32.totalorder %s59, 0
      %s62 = sadd.s32 %s61, 1
      %s63 = scalar_select %p60, %s61, %s62
      %p66 = pneg %p60
      %p67 = scmp.eq.s32.totalorder %s13, 1
      %p68 = por %p66, %p67
      %p69 = scmp.ne.s32.totalorder %s61, %s64
      %p70 = scmp.eq.s32.totalorder %s13, 0
      %p71 = por %p69, %p70
      %p72 = scmp.ne.s32.totalorder %s61, %s64
      %p73 = scmp.eq.s32.totalorder %s18, 1
      %p74 = por %p72, %p73
      %p75 = scmp.ne.s32.totalorder %s64, %s65
      %p76 = scmp.eq.s32.totalorder %s18, 0
      %p77 = por %p75, %p76
      %p78 = scmp.ne.s32.totalorder %s64, %s65
      %p79 = scmp.eq.s32.totalorder %s19, 1
      %p80 = por %p78, %p79
      %p82 = scmp.ne.s32.totalorder %s65, %s81
      %p83 = scmp.eq.s32.totalorder %s19, 0
      %p84 = por %p82, %p83
      %s85 = ssub.s32 %s21, %s28
      %p86 = scmp.eq.s32.totalorder %s85, 0
      %s88 = sadd.s32 %s87, 1
      %s89 = scalar_select %p86, %s87, %s88
      %p92 = pneg %p86
      %p93 = scmp.eq.s32.totalorder %s13, 1
      %p94 = por %p92, %p93
      %p95 = scmp.ne.s32.totalorder %s87, %s90
      %p96 = scmp.eq.s32.totalorder %s13, 0
      %p97 = por %p95, %p96
      %p98 = scmp.ne.s32.totalorder %s87, %s90
      %p99 = scmp.eq.s32.totalorder %s18, 1
      %p100 = por %p98, %p99
      %p101 = scmp.ne.s32.totalorder %s90, %s91
      %p102 = scmp.eq.s32.totalorder %s18, 0
      %p103 = por %p101, %p102
      %p104 = scmp.ne.s32.totalorder %s90, %s91
      %p105 = scmp.eq.s32.totalorder %s19, 1
      %p106 = por %p104, %p105
      %p108 = scmp.ne.s32.totalorder %s91, %s107
      %p109 = scmp.eq.s32.totalorder %s19, 0
      %p110 = por %p108, %p109
      %s111 = ssub.s32 %s20, %s32
      %s112 = ssub.s32 %s21, %s28
      %s113 = sor.u32 %s111, %s112
      %p114 = scmp.eq.s32.totalorder %s113, 0
      %s116 = sadd.s32 %s115, 1
      %s117 = scalar_select %p114, %s115, %s116
      %p120 = pneg %p114
      %p121 = scmp.eq.s32.totalorder %s13, 1
      %p122 = por %p120, %p121
      %p123 = scmp.ne.s32.totalorder %s115, %s118
      %p124 = scmp.eq.s32.totalorder %s13, 0
      %p125 = por %p123, %p124
      %p126 = scmp.ne.s32.totalorder %s115, %s118
      %p127 = scmp.eq.s32.totalorder %s18, 1
      %p128 = por %p126, %p127
      %p129 = scmp.ne.s32.totalorder %s118, %s119
      %p130 = scmp.eq.s32.totalorder %s18, 0
      %p131 = por %p129, %p130
      %p132 = scmp.ne.s32.totalorder %s118, %s119
      %p133 = scmp.eq.s32.totalorder %s19, 1
      %p134 = por %p132, %p133
      %p136 = scmp.ne.s32.totalorder %s119, %s135
      %p137 = scmp.eq.s32.totalorder %s19, 0
      %p138 = por %p136, %p137
      %p139 = scmp.le.s32.totalorder 1, %s13
      %p140 = scmp.lt.s32.totalorder %s13, 3
      %p141 = pnand %p139, %p140
      %p142 = pneg %p141
      // Predicated region
      $region9: #{tpu_custom_call.1} parent=5 // pred_check
        _
      $region10: #{tpu_custom_call.1} parent=5 // pred_check_branch
        %144 = sbr.rel (%p141) target = $region12
      $region11: #{tpu_custom_call.1} parent=5 // pred_region
        %s145 = ssub.s32 %s13, 1
        // Predicated region
        $region13: #{tpu_custom_call.1} parent=11 // pred_check
          %p146 = pneg %p77
        $region14: #{tpu_custom_call.1} parent=11 // pred_check_branch
          %148 = sbr.rel (%p146) target = $region16
        $region15: #{tpu_custom_call.1} parent=11 // pred_region
          %s150 = ssub.s32 18432, 18432
          %151 = vsyncadd [#allocation3], %s150
          %s152 = smul.addr %s23, 128
          %s153 = scalar_lea.hbm %s1, %s152
          %s154 = sshll.u32 [#allocation2], 4
          %s155 = int_to_ptr.vmem [resolvable:$true] %s154
          %160 = dma.hbm_to_vmem [thread:$0]  %s153, 18432, %s155, [#allocation3], 128, 128, 8
        $region16: #{tpu_custom_call.1} parent=11 // pred_fallthru
          _
        // Predicated region
        $region17: #{tpu_custom_call.1} parent=11 // pred_check
          %p161 = pneg %p103
        $region18: #{tpu_custom_call.1} parent=11 // pred_check_branch
          %163 = sbr.rel (%p161) target = $region20
        $region19: #{tpu_custom_call.1} parent=11 // pred_region
          %p164 = scmp.lt.s32.totalorder %s23, 0
          %s165 = scalar_select %p164, %s23, 0
          %s166 = scalar_lea.vmem %s2, %s165
        $region20: #{tpu_custom_call.1} parent=11 // pred_fallthru
          _
      $region12: #{tpu_custom_call.1} parent=5 // pred_fallthru
        _
      %p167 = scmp.lt.s32.totalorder %s13, 2
      // Predicated region
      $region21: #{tpu_custom_call.1} parent=5 // pred_check
        %p168 = pneg %p167
      $region22: #{tpu_custom_call.1} parent=5 // pred_check_branch
        %170 = sbr.rel (%p168) target = $region24
      $region23: #{tpu_custom_call.1} parent=5 // pred_region
        // Predicated region
        $region25: #{tpu_custom_call.1} parent=23 // pred_check
          %p171 = pneg %p45
        $region26: #{tpu_custom_call.1} parent=23 // pred_check_branch
          %173 = sbr.rel (%p171) target = $region28
        $region27: #{tpu_custom_call.1} parent=23 // pred_region
          %p174 = scmp.lt.s32.totalorder %s20, 1
          %s175 = scalar_select %p174, %s20, 1
          %s176 = smul.addr %s175, 20
          %s177 = smul.addr %s176, 8
          %s178 = scalar_lea.vmem %s0, %s177
        $region28: #{tpu_custom_call.1} parent=23 // pred_fallthru
          _
      $region24: #{tpu_custom_call.1} parent=5 // pred_fallthru
        _
      %p179 = scmp.le.s32.totalorder 1, %s13
      %p180 = scmp.lt.s32.totalorder %s13, 3
      %p181 = pnand %p179, %p180
      %p182 = pneg %p181
      // Predicated region
      $region29: #{tpu_custom_call.1} parent=5 // pred_check
        _
      $region30: #{tpu_custom_call.1} parent=5 // pred_check_branch
        %184 = sbr.rel (%p181) target = $region32
      $region31: #{tpu_custom_call.1} parent=5 // pred_region
        %s185 = ssub.s32 %s13, 1
        // Predicated region
        $region33: #{tpu_custom_call.1} parent=31 // pred_check
          %p186 = pneg %p77
        $region34: #{tpu_custom_call.1} parent=31 // pred_check_branch
          %188 = sbr.rel (%p186) target = $region36
        $region35: #{tpu_custom_call.1} parent=31 // pred_region
          %189 = dma.done [#allocation3], 18432
        $region36: #{tpu_custom_call.1} parent=31 // pred_fallthru
          _
        %p190 = scmp.lt.s32.totalorder %s22, 1
        %s191 = scalar_select %p190, %s22, 1
        %s192 = smul.addr %s191, 20
        %s193 = smul.addr %s192, 8
        %s194 = scalar_lea.vmem %s0, %s193
        %p195 = pneg %p51
        %p196 = pneg %p48
        %p197 = pneg %p77
        %p198 = pneg %p74
        %p199 = scmp.lt.s32.totalorder %s23, 0
        %s200 = scalar_select %p199, %s23, 0
        %s201 = scalar_lea.vmem %s2, %s200
        %p202 = pneg %p103
        %p203 = pneg %p100
        %p204 = pneg %p131
        %p205 = pneg %p128
        %s206 = sand.u32 %s118, 1
        %s207 = scalar_lea.sflag [#allocation4], %s206
        %s208 = sand.u32 %s118, 1
        %s209 = smul.addr %s208, 64
        %s210 = scalar_lea.vmem [#allocation5], %s209
        %p211 = scmp.lt.s32.totalorder %s22, 1
        %s212 = scalar_select %p211, %s22, 1
        %s213 = smul.addr %s212, 20
        %s214 = smul.addr %s213, 8
        %s215 = scalar_lea.vmem %s0, %s214
        %p216 = scmp.lt.s32.totalorder %s23, 0
        %s217 = scalar_select %p216, %s23, 0
        %s218 = scalar_lea.vmem %s2, %s217
        %v219 = vld [vmem:[%s215] sm:$0xff]
        %v220 = vld [vmem:[%s215 + $0x10] sm:$0xff]
        %v221 = vld [vmem:[%s215 + $0x20] sm:$0xff]
        %v222 = vld [vmem:[%s215 + $0x30] sm:$0xff]
        %v223 = vld [vmem:[%s215 + $0x40] sm:$0xff]
        %v224 = vld [vmem:[%s215 + $0x50] sm:$0xff]
        %v225 = vld [vmem:[%s215 + $0x60] sm:$0xff]
        %v226 = vld [vmem:[%s215 + $0x70] sm:$0xff]
        %v227 = vld [vmem:[#allocation2] sm:$0xff]
        %v228 = vld [vmem:[#allocation2 + $0x8] sm:$0xff]
        %v229 = vld [vmem:[#allocation2 + $0x10] sm:$0xff]
        %v230 = vld [vmem:[#allocation2 + $0x18] sm:$0xff]
        %v231 = vld [vmem:[#allocation2 + $0x20] sm:$0xff]
        %v232 = vld [vmem:[#allocation2 + $0x28] sm:$0xff]
        %v233 = vld [vmem:[#allocation2 + $0x30] sm:$0xff]
        %v234 = vld [vmem:[#allocation2 + $0x38] sm:$0xff]
        %v235 = vld [vmem:[#allocation2 + $0x40] sm:$0xff]
        %v236 = vld [vmem:[#allocation2 + $0x48] sm:$0xff]
        %v237 = vld [vmem:[#allocation2 + $0x50] sm:$0xff]
        %v238 = vld [vmem:[#allocation2 + $0x58] sm:$0xff]
        %v239 = vld [vmem:[#allocation2 + $0x60] sm:$0xff]
        %v240 = vld [vmem:[#allocation2 + $0x68] sm:$0xff]
        %v241 = vld [vmem:[#allocation2 + $0x70] sm:$0xff]
        %v242 = vld [vmem:[#allocation2 + $0x78] sm:$0xff]
        %v243 = vld [vmem:[%s215 + $0x1] sm:$0xff]
        %v244 = vld [vmem:[%s215 + $0x11] sm:$0xff]
        %v245 = vld [vmem:[%s215 + $0x21] sm:$0xff]
        %v246 = vld [vmem:[%s215 + $0x31] sm:$0xff]
        %v247 = vld [vmem:[%s215 + $0x41] sm:$0xff]
        %v248 = vld [vmem:[%s215 + $0x51] sm:$0xff]
        %v249 = vld [vmem:[%s215 + $0x61] sm:$0xff]
        %v250 = vld [vmem:[%s215 + $0x71] sm:$0xff]
        %s251 = scalar_lea.vmem [#allocation2], 128
        %v252 = vld [vmem:[%s251] sm:$0xff]
        %v253 = vld [vmem:[%s251 + $0x8] sm:$0xff]
        %v254 = vld [vmem:[%s251 + $0x10] sm:$0xff]
        %v255 = vld [vmem:[%s251 + $0x18] sm:$0xff]
        %v256 = vld [vmem:[%s251 + $0x20] sm:$0xff]
        %v257 = vld [vmem:[%s251 + $0x28] sm:$0xff]
        %v258 = vld [vmem:[%s251 + $0x30] sm:$0xff]
        %v259 = vld [vmem:[%s251 + $0x38] sm:$0xff]
        %v260 = vld [vmem:[%s251 + $0x40] sm:$0xff]
        %v261 = vld [vmem:[%s251 + $0x48] sm:$0xff]
        %v262 = vld [vmem:[%s251 + $0x50] sm:$0xff]
        %v263 = vld [vmem:[%s251 + $0x58] sm:$0xff]
        %v264 = vld [vmem:[%s251 + $0x60] sm:$0xff]
        %v265 = vld [vmem:[%s251 + $0x68] sm:$0xff]
        %v266 = vld [vmem:[%s251 + $0x70] sm:$0xff]
        %v267 = vld [vmem:[%s251 + $0x78] sm:$0xff]
        %268 = vmatprep.subr.mxu0 0.0
        %269 = vmatpush1.msra.mxu0 %v267
        %270 = vmatprep.subr.mxu0 0.0
        %271 = vmatpush1.msra.mxu0 %v266
        %272 = vmatprep.subr.mxu0 0.0
        %273 = vmatpush1.msra.mxu0 %v265
        %274 = vmatprep.subr.mxu0 0.0
        %275 = vmatpush1.msra.mxu0 %v264
        %276 = vmatprep.subr.mxu0 0.0
        %277 = vmatpush1.msra.mxu0 %v263
        %278 = vmatprep.subr.mxu0 0.0
        %279 = vmatpush1.msra.mxu0 %v262
        %280 = vmatprep.subr.mxu0 0.0
        %281 = vmatpush1.msra.mxu0 %v261
        %282 = vmatprep.subr.mxu0 0.0
        %283 = vmatpush1.msra.mxu0 %v260
        %284 = vmatprep.subr.mxu0 0.0
        %285 = vmatpush1.msra.mxu0 %v259
        %286 = vmatprep.subr.mxu0 0.0
        %287 = vmatpush1.msra.mxu0 %v258
        %288 = vmatprep.subr.mxu0 0.0
        %289 = vmatpush1.msra.mxu0 %v257
        %290 = vmatprep.subr.mxu0 0.0
        %291 = vmatpush1.msra.mxu0 %v256
        %292 = vmatprep.subr.mxu0 0.0
        %293 = vmatpush1.msra.mxu0 %v255
        %294 = vmatprep.subr.mxu0 0.0
        %295 = vmatpush1.msra.mxu0 %v254
        %296 = vmatprep.subr.mxu0 0.0
        %297 = vmatpush1.msra.mxu0 %v253
        %298 = vmatprep.subr.mxu0 0.0
        %299 = vmatpush1.msra.mxu0 %v252
        %300 = vmatprep.subr.mxu0 0.0
        %301 = vmatpush2.msra.mxu0 0.0
        %302 = vmatprep.subr.mxu0 0.0
        %303 = vmatpush2.msra.mxu0 0.0
        %304 = vmatprep.subr.mxu0 0.0
        %305 = vmatpush2.msra.mxu0 0.0
        %306 = vmatprep.subr.mxu0 0.0
        %307 = vmatpush2.msra.mxu0 0.0
        %308 = vmatprep.subr.mxu0 0.0
        %309 = vmatpush2.msra.mxu0 0.0
        %310 = vmatprep.subr.mxu0 0.0
        %311 = vmatpush2.msra.mxu0 0.0
        %312 = vmatprep.subr.mxu0 0.0
        %313 = vmatpush2.msra.mxu0 0.0
        %314 = vmatprep.subr.mxu0 0.0
        %315 = vmatpush2.msra.mxu0 0.0
        %316 = vmatprep.subr.mxu0 0.0
        %317 = vmatpush2.msra.mxu0 0.0
        %318 = vmatprep.subr.mxu0 0.0
        %319 = vmatpush2.msra.mxu0 0.0
        %320 = vmatprep.subr.mxu0 0.0
        %321 = vmatpush2.msra.mxu0 0.0
        %322 = vmatprep.subr.mxu0 0.0
        %323 = vmatpush2.msra.mxu0 0.0
        %324 = vmatprep.subr.mxu0 0.0
        %325 = vmatpush2.msra.mxu0 0.0
        %326 = vmatprep.subr.mxu0 0.0
        %327 = vmatpush2.msra.mxu0 0.0
        %328 = vmatprep.subr.mxu0 0.0
        %329 = vmatpush2.msra.mxu0 0.0
        %330 = vmatprep.subr.mxu0 0.0
        %331 = vmatpush2.msra.mxu0 0.0
        %332 = vmatprep.mubr.f32.mxu0 0.0
        %333 = vmatmul.mubr.f32.gmra.mxu0 %v243
        %v334 = vpop.f32.mrf.mxu0
        %v335 = vadd.f32 0.0, %v334
        %v336 = vpop.f32.mrf.mxu0
        %337 = vmatprep.mubr.f32.mxu0 0.0
        %338 = vmatmul.mubr.f32.gmra.mxu0 %v244
        %v339 = vpop.f32.mrf.mxu0
        %v340 = vadd.f32 0.0, %v339
        %v341 = vpop.f32.mrf.mxu0
        %342 = vmatprep.mubr.f32.mxu0 0.0
        %343 = vmatmul.mubr.f32.gmra.mxu0 %v245
        %v344 = vpop.f32.mrf.mxu0
        %v345 = vadd.f32 0.0, %v344
        %v346 = vpop.f32.mrf.mxu0
        %347 = vmatprep.mubr.f32.mxu0 0.0
        %348 = vmatmul.mubr.f32.gmra.mxu0 %v246
        %v349 = vpop.f32.mrf.mxu0
        %v350 = vadd.f32 0.0, %v349
        %v351 = vpop.f32.mrf.mxu0
        %352 = vmatprep.mubr.f32.mxu0 0.0
        %353 = vmatmul.mubr.f32.gmra.mxu0 %v247
        %v354 = vpop.f32.mrf.mxu0
        %v355 = vadd.f32 0.0, %v354
        %v356 = vpop.f32.mrf.mxu0
        %357 = vmatprep.mubr.f32.mxu0 0.0
        %358 = vmatmul.mubr.f32.gmra.mxu0 %v248
        %v359 = vpop.f32.mrf.mxu0
        %v360 = vadd.f32 0.0, %v359
        %v361 = vpop.f32.mrf.mxu0
        %362 = vmatprep.mubr.f32.mxu0 0.0
        %363 = vmatmul.mubr.f32.gmra.mxu0 %v249
        %v364 = vpop.f32.mrf.mxu0
        %v365 = vadd.f32 0.0, %v364
        %v366 = vpop.f32.mrf.mxu0
        %367 = vmatprep.mubr.f32.mxu0 0.0
        %368 = vmatmul.mubr.f32.gmra.mxu0 %v250
        %v369 = vpop.f32.mrf.mxu0
        %v370 = vadd.f32 0.0, %v369
        %v371 = vpop.f32.mrf.mxu0
        %372 = vdwg.mxu0
        %373 = vmatprep.subr.mxu0 0.0
        %374 = vmatpush1.msra.mxu0 %v242
        %375 = vmatprep.subr.mxu0 0.0
        %376 = vmatpush1.msra.mxu0 %v241
        %377 = vmatprep.subr.mxu0 0.0
        %378 = vmatpush1.msra.mxu0 %v240
        %379 = vmatprep.subr.mxu0 0.0
        %380 = vmatpush1.msra.mxu0 %v239
        %381 = vmatprep.subr.mxu0 0.0
        %382 = vmatpush1.msra.mxu0 %v238
        %383 = vmatprep.subr.mxu0 0.0
        %384 = vmatpush1.msra.mxu0 %v237
        %385 = vmatprep.subr.mxu0 0.0
        %386 = vmatpush1.msra.mxu0 %v236
        %387 = vmatprep.subr.mxu0 0.0
        %388 = vmatpush1.msra.mxu0 %v235
        %389 = vmatprep.subr.mxu0 0.0
        %390 = vmatpush1.msra.mxu0 %v234
        %391 = vmatprep.subr.mxu0 0.0
        %392 = vmatpush1.msra.mxu0 %v233
        %393 = vmatprep.subr.mxu0 0.0
        %394 = vmatpush1.msra.mxu0 %v232
        %395 = vmatprep.subr.mxu0 0.0
        %396 = vmatpush1.msra.mxu0 %v231
        %397 = vmatprep.subr.mxu0 0.0
        %398 = vmatpush1.msra.mxu0 %v230
        %399 = vmatprep.subr.mxu0 0.0
        %400 = vmatpush1.msra.mxu0 %v229
        %401 = vmatprep.subr.mxu0 0.0
        %402 = vmatpush1.msra.mxu0 %v228
        %403 = vmatprep.subr.mxu0 0.0
        %404 = vmatpush1.msra.mxu0 %v227
        %405 = vmatprep.subr.mxu0 0.0
        %406 = vmatpush2.msra.mxu0 0.0
        %407 = vmatprep.subr.mxu0 0.0
        %408 = vmatpush2.msra.mxu0 0.0
        %409 = vmatprep.subr.mxu0 0.0
        %410 = vmatpush2.msra.mxu0 0.0
        %411 = vmatprep.subr.mxu0 0.0
        %412 = vmatpush2.msra.mxu0 0.0
        %413 = vmatprep.subr.mxu0 0.0
        %414 = vmatpush2.msra.mxu0 0.0
        %415 = vmatprep.subr.mxu0 0.0
        %416 = vmatpush2.msra.mxu0 0.0
        %417 = vmatprep.subr.mxu0 0.0
        %418 = vmatpush2.msra.mxu0 0.0
        %419 = vmatprep.subr.mxu0 0.0
        %420 = vmatpush2.msra.mxu0 0.0
        %421 = vmatprep.subr.mxu0 0.0
        %422 = vmatpush2.msra.mxu0 0.0
        %423 = vmatprep.subr.mxu0 0.0
        %424 = vmatpush2.msra.mxu0 0.0
        %425 = vmatprep.subr.mxu0 0.0
        %426 = vmatpush2.msra.mxu0 0.0
        %427 = vmatprep.subr.mxu0 0.0
        %428 = vmatpush2.msra.mxu0 0.0
        %429 = vmatprep.subr.mxu0 0.0
        %430 = vmatpush2.msra.mxu0 0.0
        %431 = vmatprep.subr.mxu0 0.0
        %432 = vmatpush2.msra.mxu0 0.0
        %433 = vmatprep.subr.mxu0 0.0
        %434 = vmatpush2.msra.mxu0 0.0
        %435 = vmatprep.subr.mxu0 0.0
        %436 = vmatpush2.msra.mxu0 0.0
        %437 = vmatprep.mubr.f32.mxu0 0.0
        %438 = vmatmul.mubr.f32.gmra.mxu0 %v219
        %v439 = vpop.f32.mrf.mxu0
        %v440 = vadd.f32 %v335, %v439
        %v441 = vpop.f32.mrf.mxu0
        %442 = vmatprep.mubr.f32.mxu0 0.0
        %443 = vmatmul.mubr.f32.gmra.mxu0 %v220
        %v444 = vpop.f32.mrf.mxu0
        %v445 = vadd.f32 %v340, %v444
        %v446 = vpop.f32.mrf.mxu0
        %447 = vmatprep.mubr.f32.mxu0 0.0
        %448 = vmatmul.mubr.f32.gmra.mxu0 %v221
        %v449 = vpop.f32.mrf.mxu0
        %v450 = vadd.f32 %v345, %v449
        %v451 = vpop.f32.mrf.mxu0
        %452 = vmatprep.mubr.f32.mxu0 0.0
        %453 = vmatmul.mubr.f32.gmra.mxu0 %v222
        %v454 = vpop.f32.mrf.mxu0
        %v455 = vadd.f32 %v350, %v454
        %v456 = vpop.f32.mrf.mxu0
        %457 = vmatprep.mubr.f32.mxu0 0.0
        %458 = vmatmul.mubr.f32.gmra.mxu0 %v223
        %v459 = vpop.f32.mrf.mxu0
        %v460 = vadd.f32 %v355, %v459
        %v461 = vpop.f32.mrf.mxu0
        %462 = vmatprep.mubr.f32.mxu0 0.0
        %463 = vmatmul.mubr.f32.gmra.mxu0 %v224
        %v464 = vpop.f32.mrf.mxu0
        %v465 = vadd.f32 %v360, %v464
        %v466 = vpop.f32.mrf.mxu0
        %467 = vmatprep.mubr.f32.mxu0 0.0
        %468 = vmatmul.mubr.f32.gmra.mxu0 %v225
        %v469 = vpop.f32.mrf.mxu0
        %v470 = vadd.f32 %v365, %v469
        %v471 = vpop.f32.mrf.mxu0
        %472 = vmatprep.mubr.f32.mxu0 0.0
        %473 = vmatmul.mubr.f32.gmra.mxu0 %v226
        %v474 = vpop.f32.mrf.mxu0
        %v475 = vadd.f32 %v370, %v474
        %v476 = vpop.f32.mrf.mxu0
        %477 = vdwg.mxu0
        %v478 = vld [vmem:[%s215 + $0x2] sm:$0xff]
        %v479 = vld [vmem:[%s215 + $0x12] sm:$0xff]
        %v480 = vld [vmem:[%s215 + $0x22] sm:$0xff]
        %v481 = vld [vmem:[%s215 + $0x32] sm:$0xff]
        %v482 = vld [vmem:[%s215 + $0x42] sm:$0xff]
        %v483 = vld [vmem:[%s215 + $0x52] sm:$0xff]
        %v484 = vld [vmem:[%s215 + $0x62] sm:$0xff]
        %v485 = vld [vmem:[%s215 + $0x72] sm:$0xff]
        %s486 = scalar_lea.vmem [#allocation2], 256
        %v487 = vld [vmem:[%s486] sm:$0xff]
        %v488 = vld [vmem:[%s486 + $0x8] sm:$0xff]
        %v489 = vld [vmem:[%s486 + $0x10] sm:$0xff]
        %v490 = vld [vmem:[%s486 + $0x18] sm:$0xff]
        %v491 = vld [vmem:[%s486 + $0x20] sm:$0xff]
        %v492 = vld [vmem:[%s486 + $0x28] sm:$0xff]
        %v493 = vld [vmem:[%s486 + $0x30] sm:$0xff]
        %v494 = vld [vmem:[%s486 + $0x38] sm:$0xff]
        %v495 = vld [vmem:[%s486 + $0x40] sm:$0xff]
        %v496 = vld [vmem:[%s486 + $0x48] sm:$0xff]
        %v497 = vld [vmem:[%s486 + $0x50] sm:$0xff]
        %v498 = vld [vmem:[%s486 + $0x58] sm:$0xff]
        %v499 = vld [vmem:[%s486 + $0x60] sm:$0xff]
        %v500 = vld [vmem:[%s486 + $0x68] sm:$0xff]
        %v501 = vld [vmem:[%s486 + $0x70] sm:$0xff]
        %v502 = vld [vmem:[%s486 + $0x78] sm:$0xff]
        %503 = vmatprep.subr.mxu0 0.0
        %504 = vmatpush1.msra.mxu0 %v502
        %505 = vmatprep.subr.mxu0 0.0
        %506 = vmatpush1.msra.mxu0 %v501
        %507 = vmatprep.subr.mxu0 0.0
        %508 = vmatpush1.msra.mxu0 %v500
        %509 = vmatprep.subr.mxu0 0.0
        %510 = vmatpush1.msra.mxu0 %v499
        %511 = vmatprep.subr.mxu0 0.0
        %512 = vmatpush1.msra.mxu0 %v498
        %513 = vmatprep.subr.mxu0 0.0
        %514 = vmatpush1.msra.mxu0 %v497
        %515 = vmatprep.subr.mxu0 0.0
        %516 = vmatpush1.msra.mxu0 %v496
        %517 = vmatprep.subr.mxu0 0.0
        %518 = vmatpush1.msra.mxu0 %v495
        %519 = vmatprep.subr.mxu0 0.0
        %520 = vmatpush1.msra.mxu0 %v494
        %521 = vmatprep.subr.mxu0 0.0
        %522 = vmatpush1.msra.mxu0 %v493
        %523 = vmatprep.subr.mxu0 0.0
        %524 = vmatpush1.msra.mxu0 %v492
        %525 = vmatprep.subr.mxu0 0.0
        %526 = vmatpush1.msra.mxu0 %v491
        %527 = vmatprep.subr.mxu0 0.0
        %528 = vmatpush1.msra.mxu0 %v490
        %529 = vmatprep.subr.mxu0 0.0
        %530 = vmatpush1.msra.mxu0 %v489
        %531 = vmatprep.subr.mxu0 0.0
        %532 = vmatpush1.msra.mxu0 %v488
        %533 = vmatprep.subr.mxu0 0.0
        %534 = vmatpush1.msra.mxu0 %v487
        %535 = vmatprep.subr.mxu0 0.0
        %536 = vmatpush2.msra.mxu0 0.0
        %537 = vmatprep.subr.mxu0 0.0
        %538 = vmatpush2.msra.mxu0 0.0
        %539 = vmatprep.subr.mxu0 0.0
        %540 = vmatpush2.msra.mxu0 0.0
        %541 = vmatprep.subr.mxu0 0.0
        %542 = vmatpush2.msra.mxu0 0.0
        %543 = vmatprep.subr.mxu0 0.0
        %544 = vmatpush2.msra.mxu0 0.0
        %545 = vmatprep.subr.mxu0 0.0
        %546 = vmatpush2.msra.mxu0 0.0
        %547 = vmatprep.subr.mxu0 0.0
        %548 = vmatpush2.msra.mxu0 0.0
        %549 = vmatprep.subr.mxu0 0.0
        %550 = vmatpush2.msra.mxu0 0.0
        %551 = vmatprep.subr.mxu0 0.0
        %552 = vmatpush2.msra.mxu0 0.0
        %553 = vmatprep.subr.mxu0 0.0
        %554 = vmatpush2.msra.mxu0 0.0
        %555 = vmatprep.subr.mxu0 0.0
        %556 = vmatpush2.msra.mxu0 0.0
        %557 = vmatprep.subr.mxu0 0.0
        %558 = vmatpush2.msra.mxu0 0.0
        %559 = vmatprep.subr.mxu0 0.0
        %560 = vmatpush2.msra.mxu0 0.0
        %561 = vmatprep.subr.mxu0 0.0
        %562 = vmatpush2.msra.mxu0 0.0
        %563 = vmatprep.subr.mxu0 0.0
        %564 = vmatpush2.msra.mxu0 0.0
        %565 = vmatprep.subr.mxu0 0.0
        %566 = vmatpush2.msra.mxu0 0.0
        %567 = vmatprep.mubr.f32.mxu0 0.0
        %568 = vmatmul.mubr.f32.gmra.mxu0 %v478
        %v569 = vpop.f32.mrf.mxu0
        %v570 = vadd.f32 0.0, %v569
        %v571 = vpop.f32.mrf.mxu0
        %572 = vmatprep.mubr.f32.mxu0 0.0
        %573 = vmatmul.mubr.f32.gmra.mxu0 %v479
        %v574 = vpop.f32.mrf.mxu0
        %v575 = vadd.f32 0.0, %v574
        %v576 = vpop.f32.mrf.mxu0
        %577 = vmatprep.mubr.f32.mxu0 0.0
        %578 = vmatmul.mubr.f32.gmra.mxu0 %v480
        %v579 = vpop.f32.mrf.mxu0
        %v580 = vadd.f32 0.0, %v579
        %v581 = vpop.f32.mrf.mxu0
        %582 = vmatprep.mubr.f32.mxu0 0.0
        %583 = vmatmul.mubr.f32.gmra.mxu0 %v481
        %v584 = vpop.f32.mrf.mxu0
        %v585 = vadd.f32 0.0, %v584
        %v586 = vpop.f32.mrf.mxu0
        %587 = vmatprep.mubr.f32.mxu0 0.0
        %588 = vmatmul.mubr.f32.gmra.mxu0 %v482
        %v589 = vpop.f32.mrf.mxu0
        %v590 = vadd.f32 0.0, %v589
        %v591 = vpop.f32.mrf.mxu0
        %592 = vmatprep.mubr.f32.mxu0 0.0
        %593 = vmatmul.mubr.f32.gmra.mxu0 %v483
        %v594 = vpop.f32.mrf.mxu0
        %v595 = vadd.f32 0.0, %v594
        %v596 = vpop.f32.mrf.mxu0
        %597 = vmatprep.mubr.f32.mxu0 0.0
        %598 = vmatmul.mubr.f32.gmra.mxu0 %v484
        %v599 = vpop.f32.mrf.mxu0
        %v600 = vadd.f32 0.0, %v599
        %v601 = vpop.f32.mrf.mxu0
        %602 = vmatprep.mubr.f32.mxu0 0.0
        %603 = vmatmul.mubr.f32.gmra.mxu0 %v485
        %v604 = vpop.f32.mrf.mxu0
        %v605 = vadd.f32 0.0, %v604
        %v606 = vpop.f32.mrf.mxu0
        %607 = vdwg.mxu0
        %v608 = vadd.f32 %v440, %v570
        %v609 = vadd.f32 %v445, %v575
        %v610 = vadd.f32 %v450, %v580
        %v611 = vadd.f32 %v455, %v585
        %v612 = vadd.f32 %v460, %v590
        %v613 = vadd.f32 %v465, %v595
        %v614 = vadd.f32 %v470, %v600
        %v615 = vadd.f32 %v475, %v605
        %s616 = scalar_lea.vmem %s215, 16
        %v617 = vld [vmem:[%s616] sm:$0xff]
        %v618 = vld [vmem:[%s616 + $0x10] sm:$0xff]
        %v619 = vld [vmem:[%s616 + $0x20] sm:$0xff]
        %v620 = vld [vmem:[%s616 + $0x30] sm:$0xff]
        %v621 = vld [vmem:[%s616 + $0x40] sm:$0xff]
        %v622 = vld [vmem:[%s616 + $0x50] sm:$0xff]
        %v623 = vld [vmem:[%s616 + $0x60] sm:$0xff]
        %v624 = vld [vmem:[%s616 + $0x70] sm:$0xff]
        %s625 = scalar_lea.vmem [#allocation2], 384
        %v626 = vld [vmem:[%s625] sm:$0xff]
        %v627 = vld [vmem:[%s625 + $0x8] sm:$0xff]
        %v628 = vld [vmem:[%s625 + $0x10] sm:$0xff]
        %v629 = vld [vmem:[%s625 + $0x18] sm:$0xff]
        %v630 = vld [vmem:[%s625 + $0x20] sm:$0xff]
        %v631 = vld [vmem:[%s625 + $0x28] sm:$0xff]
        %v632 = vld [vmem:[%s625 + $0x30] sm:$0xff]
        %v633 = vld [vmem:[%s625 + $0x38] sm:$0xff]
        %v634 = vld [vmem:[%s625 + $0x40] sm:$0xff]
        %v635 = vld [vmem:[%s625 + $0x48] sm:$0xff]
        %v636 = vld [vmem:[%s625 + $0x50] sm:$0xff]
        %v637 = vld [vmem:[%s625 + $0x58] sm:$0xff]
        %v638 = vld [vmem:[%s625 + $0x60] sm:$0xff]
        %v639 = vld [vmem:[%s625 + $0x68] sm:$0xff]
        %v640 = vld [vmem:[%s625 + $0x70] sm:$0xff]
        %v641 = vld [vmem:[%s625 + $0x78] sm:$0xff]
        %642 = vmatprep.subr.mxu0 0.0
        %643 = vmatpush1.msra.mxu0 %v641
        %644 = vmatprep.subr.mxu0 0.0
        %645 = vmatpush1.msra.mxu0 %v640
        %646 = vmatprep.subr.mxu0 0.0
        %647 = vmatpush1.msra.mxu0 %v639
        %648 = vmatprep.subr.mxu0 0.0
        %649 = vmatpush1.msra.mxu0 %v638
        %650 = vmatprep.subr.mxu0 0.0
        %651 = vmatpush1.msra.mxu0 %v637
        %652 = vmatprep.subr.mxu0 0.0
        %653 = vmatpush1.msra.mxu0 %v636
        %654 = vmatprep.subr.mxu0 0.0
        %655 = vmatpush1.msra.mxu0 %v635
        %656 = vmatprep.subr.mxu0 0.0
        %657 = vmatpush1.msra.mxu0 %v634
        %658 = vmatprep.subr.mxu0 0.0
        %659 = vmatpush1.msra.mxu0 %v633
        %660 = vmatprep.subr.mxu0 0.0
        %661 = vmatpush1.msra.mxu0 %v632
        %662 = vmatprep.subr.mxu0 0.0
        %663 = vmatpush1.msra.mxu0 %v631
        %664 = vmatprep.subr.mxu0 0.0
        %665 = vmatpush1.msra.mxu0 %v630
        %666 = vmatprep.subr.mxu0 0.0
        %667 = vmatpush1.msra.mxu0 %v629
        %668 = vmatprep.subr.mxu0 0.0
        %669 = vmatpush1.msra.mxu0 %v628
        %670 = vmatprep.subr.mxu0 0.0
        %671 = vmatpush1.msra.mxu0 %v627
        %672 = vmatprep.subr.mxu0 0.0
        %673 = vmatpush1.msra.mxu0 %v626
        %674 = vmatprep.subr.mxu0 0.0
        %675 = vmatpush2.msra.mxu0 0.0
        %676 = vmatprep.subr.mxu0 0.0
        %677 = vmatpush2.msra.mxu0 0.0
        %678 = vmatprep.subr.mxu0 0.0
        %679 = vmatpush2.msra.mxu0 0.0
        %680 = vmatprep.subr.mxu0 0.0
        %681 = vmatpush2.msra.mxu0 0.0
        %682 = vmatprep.subr.mxu0 0.0
        %683 = vmatpush2.msra.mxu0 0.0
        %684 = vmatprep.subr.mxu0 0.0
        %685 = vmatpush2.msra.mxu0 0.0
        %686 = vmatprep.subr.mxu0 0.0
        %687 = vmatpush2.msra.mxu0 0.0
        %688 = vmatprep.subr.mxu0 0.0
        %689 = vmatpush2.msra.mxu0 0.0
        %690 = vmatprep.subr.mxu0 0.0
        %691 = vmatpush2.msra.mxu0 0.0
        %692 = vmatprep.subr.mxu0 0.0
        %693 = vmatpush2.msra.mxu0 0.0
        %694 = vmatprep.subr.mxu0 0.0
        %695 = vmatpush2.msra.mxu0 0.0
        %696 = vmatprep.subr.mxu0 0.0
        %697 = vmatpush2.msra.mxu0 0.0
        %698 = vmatprep.subr.mxu0 0.0
        %699 = vmatpush2.msra.mxu0 0.0
        %700 = vmatprep.subr.mxu0 0.0
        %701 = vmatpush2.msra.mxu0 0.0
        %702 = vmatprep.subr.mxu0 0.0
        %703 = vmatpush2.msra.mxu0 0.0
        %704 = vmatprep.subr.mxu0 0.0
        %705 = vmatpush2.msra.mxu0 0.0
        %706 = vmatprep.mubr.f32.mxu0 0.0
        %707 = vmatmul.mubr.f32.gmra.mxu0 %v617
        %v708 = vpop.f32.mrf.mxu0
        %v709 = vadd.f32 0.0, %v708
        %v710 = vpop.f32.mrf.mxu0
        %711 = vmatprep.mubr.f32.mxu0 0.0
        %712 = vmatmul.mubr.f32.gmra.mxu0 %v618
        %v713 = vpop.f32.mrf.mxu0
        %v714 = vadd.f32 0.0, %v713
        %v715 = vpop.f32.mrf.mxu0
        %716 = vmatprep.mubr.f32.mxu0 0.0
        %717 = vmatmul.mubr.f32.gmra.mxu0 %v619
        %v718 = vpop.f32.mrf.mxu0
        %v719 = vadd.f32 0.0, %v718
        %v720 = vpop.f32.mrf.mxu0
        %721 = vmatprep.mubr.f32.mxu0 0.0
        %722 = vmatmul.mubr.f32.gmra.mxu0 %v620
        %v723 = vpop.f32.mrf.mxu0
        %v724 = vadd.f32 0.0, %v723
        %v725 = vpop.f32.mrf.mxu0
        %726 = vmatprep.mubr.f32.mxu0 0.0
        %727 = vmatmul.mubr.f32.gmra.mxu0 %v621
        %v728 = vpop.f32.mrf.mxu0
        %v729 = vadd.f32 0.0, %v728
        %v730 = vpop.f32.mrf.mxu0
        %731 = vmatprep.mubr.f32.mxu0 0.0
        %732 = vmatmul.mubr.f32.gmra.mxu0 %v622
        %v733 = vpop.f32.mrf.mxu0
        %v734 = vadd.f32 0.0, %v733
        %v735 = vpop.f32.mrf.mxu0
        %736 = vmatprep.mubr.f32.mxu0 0.0
        %737 = vmatmul.mubr.f32.gmra.mxu0 %v623
        %v738 = vpop.f32.mrf.mxu0
        %v739 = vadd.f32 0.0, %v738
        %v740 = vpop.f32.mrf.mxu0
        %741 = vmatprep.mubr.f32.mxu0 0.0
        %742 = vmatmul.mubr.f32.gmra.mxu0 %v624
        %v743 = vpop.f32.mrf.mxu0
        %v744 = vadd.f32 0.0, %v743
        %v745 = vpop.f32.mrf.mxu0
        %746 = vdwg.mxu0
        %v747 = vadd.f32 %v608, %v709
        %v748 = vadd.f32 %v609, %v714
        %v749 = vadd.f32 %v610, %v719
        %v750 = vadd.f32 %v611, %v724
        %v751 = vadd.f32 %v612, %v729
        %v752 = vadd.f32 %v613, %v734
        %v753 = vadd.f32 %v614, %v739
        %v754 = vadd.f32 %v615, %v744
        %v755 = vld [vmem:[%s616 + $0x1] sm:$0xff]
        %v756 = vld [vmem:[%s616 + $0x11] sm:$0xff]
        %v757 = vld [vmem:[%s616 + $0x21] sm:$0xff]
        %v758 = vld [vmem:[%s616 + $0x31] sm:$0xff]
        %v759 = vld [vmem:[%s616 + $0x41] sm:$0xff]
        %v760 = vld [vmem:[%s616 + $0x51] sm:$0xff]
        %v761 = vld [vmem:[%s616 + $0x61] sm:$0xff]
        %v762 = vld [vmem:[%s616 + $0x71] sm:$0xff]
        %s763 = scalar_lea.vmem [#allocation2], 512
        %v764 = vld [vmem:[%s763] sm:$0xff]
        %v765 = vld [vmem:[%s763 + $0x8] sm:$0xff]
        %v766 = vld [vmem:[%s763 + $0x10] sm:$0xff]
        %v767 = vld [vmem:[%s763 + $0x18] sm:$0xff]
        %v768 = vld [vmem:[%s763 + $0x20] sm:$0xff]
        %v769 = vld [vmem:[%s763 + $0x28] sm:$0xff]
        %v770 = vld [vmem:[%s763 + $0x30] sm:$0xff]
        %v771 = vld [vmem:[%s763 + $0x38] sm:$0xff]
        %v772 = vld [vmem:[%s763 + $0x40] sm:$0xff]
        %v773 = vld [vmem:[%s763 + $0x48] sm:$0xff]
        %v774 = vld [vmem:[%s763 + $0x50] sm:$0xff]
        %v775 = vld [vmem:[%s763 + $0x58] sm:$0xff]
        %v776 = vld [vmem:[%s763 + $0x60] sm:$0xff]
        %v777 = vld [vmem:[%s763 + $0x68] sm:$0xff]
        %v778 = vld [vmem:[%s763 + $0x70] sm:$0xff]
        %v779 = vld [vmem:[%s763 + $0x78] sm:$0xff]
        %780 = vmatprep.subr.mxu0 0.0
        %781 = vmatpush1.msra.mxu0 %v779
        %782 = vmatprep.subr.mxu0 0.0
        %783 = vmatpush1.msra.mxu0 %v778
        %784 = vmatprep.subr.mxu0 0.0
        %785 = vmatpush1.msra.mxu0 %v777
        %786 = vmatprep.subr.mxu0 0.0
        %787 = vmatpush1.msra.mxu0 %v776
        %788 = vmatprep.subr.mxu0 0.0
        %789 = vmatpush1.msra.mxu0 %v775
        %790 = vmatprep.subr.mxu0 0.0
        %791 = vmatpush1.msra.mxu0 %v774
        %792 = vmatprep.subr.mxu0 0.0
        %793 = vmatpush1.msra.mxu0 %v773
        %794 = vmatprep.subr.mxu0 0.0
        %795 = vmatpush1.msra.mxu0 %v772
        %796 = vmatprep.subr.mxu0 0.0
        %797 = vmatpush1.msra.mxu0 %v771
        %798 = vmatprep.subr.mxu0 0.0
        %799 = vmatpush1.msra.mxu0 %v770
        %800 = vmatprep.subr.mxu0 0.0
        %801 = vmatpush1.msra.mxu0 %v769
        %802 = vmatprep.subr.mxu0 0.0
        %803 = vmatpush1.msra.mxu0 %v768
        %804 = vmatprep.subr.mxu0 0.0
        %805 = vmatpush1.msra.mxu0 %v767
        %806 = vmatprep.subr.mxu0 0.0
        %807 = vmatpush1.msra.mxu0 %v766
        %808 = vmatprep.subr.mxu0 0.0
        %809 = vmatpush1.msra.mxu0 %v765
        %810 = vmatprep.subr.mxu0 0.0
        %811 = vmatpush1.msra.mxu0 %v764
        %812 = vmatprep.subr.mxu0 0.0
        %813 = vmatpush2.msra.mxu0 0.0
        %814 = vmatprep.subr.mxu0 0.0
        %815 = vmatpush2.msra.mxu0 0.0
        %816 = vmatprep.subr.mxu0 0.0
        %817 = vmatpush2.msra.mxu0 0.0
        %818 = vmatprep.subr.mxu0 0.0
        %819 = vmatpush2.msra.mxu0 0.0
        %820 = vmatprep.subr.mxu0 0.0
        %821 = vmatpush2.msra.mxu0 0.0
        %822 = vmatprep.subr.mxu0 0.0
        %823 = vmatpush2.msra.mxu0 0.0
        %824 = vmatprep.subr.mxu0 0.0
        %825 = vmatpush2.msra.mxu0 0.0
        %826 = vmatprep.subr.mxu0 0.0
        %827 = vmatpush2.msra.mxu0 0.0
        %828 = vmatprep.subr.mxu0 0.0
        %829 = vmatpush2.msra.mxu0 0.0
        %830 = vmatprep.subr.mxu0 0.0
        %831 = vmatpush2.msra.mxu0 0.0
        %832 = vmatprep.subr.mxu0 0.0
        %833 = vmatpush2.msra.mxu0 0.0
        %834 = vmatprep.subr.mxu0 0.0
        %835 = vmatpush2.msra.mxu0 0.0
        %836 = vmatprep.subr.mxu0 0.0
        %837 = vmatpush2.msra.mxu0 0.0
        %838 = vmatprep.subr.mxu0 0.0
        %839 = vmatpush2.msra.mxu0 0.0
        %840 = vmatprep.subr.mxu0 0.0
        %841 = vmatpush2.msra.mxu0 0.0
        %842 = vmatprep.subr.mxu0 0.0
        %843 = vmatpush2.msra.mxu0 0.0
        %844 = vmatprep.mubr.f32.mxu0 0.0
        %845 = vmatmul.mubr.f32.gmra.mxu0 %v755
        %v846 = vpop.f32.mrf.mxu0
        %v847 = vadd.f32 0.0, %v846
        %v848 = vpop.f32.mrf.mxu0
        %849 = vmatprep.mubr.f32.mxu0 0.0
        %850 = vmatmul.mubr.f32.gmra.mxu0 %v756
        %v851 = vpop.f32.mrf.mxu0
        %v852 = vadd.f32 0.0, %v851
        %v853 = vpop.f32.mrf.mxu0
        %854 = vmatprep.mubr.f32.mxu0 0.0
        %855 = vmatmul.mubr.f32.gmra.mxu0 %v757
        %v856 = vpop.f32.mrf.mxu0
        %v857 = vadd.f32 0.0, %v856
        %v858 = vpop.f32.mrf.mxu0
        %859 = vmatprep.mubr.f32.mxu0 0.0
        %860 = vmatmul.mubr.f32.gmra.mxu0 %v758
        %v861 = vpop.f32.mrf.mxu0
        %v862 = vadd.f32 0.0, %v861
        %v863 = vpop.f32.mrf.mxu0
        %864 = vmatprep.mubr.f32.mxu0 0.0
        %865 = vmatmul.mubr.f32.gmra.mxu0 %v759
        %v866 = vpop.f32.mrf.mxu0
        %v867 = vadd.f32 0.0, %v866
        %v868 = vpop.f32.mrf.mxu0
        %869 = vmatprep.mubr.f32.mxu0 0.0
        %870 = vmatmul.mubr.f32.gmra.mxu0 %v760
        %v871 = vpop.f32.mrf.mxu0
        %v872 = vadd.f32 0.0, %v871
        %v873 = vpop.f32.mrf.mxu0
        %874 = vmatprep.mubr.f32.mxu0 0.0
        %875 = vmatmul.mubr.f32.gmra.mxu0 %v761
        %v876 = vpop.f32.mrf.mxu0
        %v877 = vadd.f32 0.0, %v876
        %v878 = vpop.f32.mrf.mxu0
        %879 = vmatprep.mubr.f32.mxu0 0.0
        %880 = vmatmul.mubr.f32.gmra.mxu0 %v762
        %v881 = vpop.f32.mrf.mxu0
        %v882 = vadd.f32 0.0, %v881
        %v883 = vpop.f32.mrf.mxu0
        %884 = vdwg.mxu0
        %v885 = vadd.f32 %v747, %v847
        %v886 = vadd.f32 %v748, %v852
        %v887 = vadd.f32 %v749, %v857
        %v888 = vadd.f32 %v750, %v862
        %v889 = vadd.f32 %v751, %v867
        %v890 = vadd.f32 %v752, %v872
        %v891 = vadd.f32 %v753, %v877
        %v892 = vadd.f32 %v754, %v882
        %v893 = vld [vmem:[%s616 + $0x2] sm:$0xff]
        %v894 = vld [vmem:[%s616 + $0x12] sm:$0xff]
        %v895 = vld [vmem:[%s616 + $0x22] sm:$0xff]
        %v896 = vld [vmem:[%s616 + $0x32] sm:$0xff]
        %v897 = vld [vmem:[%s616 + $0x42] sm:$0xff]
        %v898 = vld [vmem:[%s616 + $0x52] sm:$0xff]
        %v899 = vld [vmem:[%s616 + $0x62] sm:$0xff]
        %v900 = vld [vmem:[%s616 + $0x72] sm:$0xff]
        %s901 = scalar_lea.vmem [#allocation2], 640
        %v902 = vld [vmem:[%s901] sm:$0xff]
        %v903 = vld [vmem:[%s901 + $0x8] sm:$0xff]
        %v904 = vld [vmem:[%s901 + $0x10] sm:$0xff]
        %v905 = vld [vmem:[%s901 + $0x18] sm:$0xff]
        %v906 = vld [vmem:[%s901 + $0x20] sm:$0xff]
        %v907 = vld [vmem:[%s901 + $0x28] sm:$0xff]
        %v908 = vld [vmem:[%s901 + $0x30] sm:$0xff]
        %v909 = vld [vmem:[%s901 + $0x38] sm:$0xff]
        %v910 = vld [vmem:[%s901 + $0x40] sm:$0xff]
        %v911 = vld [vmem:[%s901 + $0x48] sm:$0xff]
        %v912 = vld [vmem:[%s901 + $0x50] sm:$0xff]
        %v913 = vld [vmem:[%s901 + $0x58] sm:$0xff]
        %v914 = vld [vmem:[%s901 + $0x60] sm:$0xff]
        %v915 = vld [vmem:[%s901 + $0x68] sm:$0xff]
        %v916 = vld [vmem:[%s901 + $0x70] sm:$0xff]
        %v917 = vld [vmem:[%s901 + $0x78] sm:$0xff]
        %918 = vmatprep.subr.mxu0 0.0
        %919 = vmatpush1.msra.mxu0 %v917
        %920 = vmatprep.subr.mxu0 0.0
        %921 = vmatpush1.msra.mxu0 %v916
        %922 = vmatprep.subr.mxu0 0.0
        %923 = vmatpush1.msra.mxu0 %v915
        %924 = vmatprep.subr.mxu0 0.0
        %925 = vmatpush1.msra.mxu0 %v914
        %926 = vmatprep.subr.mxu0 0.0
        %927 = vmatpush1.msra.mxu0 %v913
        %928 = vmatprep.subr.mxu0 0.0
        %929 = vmatpush1.msra.mxu0 %v912
        %930 = vmatprep.subr.mxu0 0.0
        %931 = vmatpush1.msra.mxu0 %v911
        %932 = vmatprep.subr.mxu0 0.0
        %933 = vmatpush1.msra.mxu0 %v910
        %934 = vmatprep.subr.mxu0 0.0
        %935 = vmatpush1.msra.mxu0 %v909
        %936 = vmatprep.subr.mxu0 0.0
        %937 = vmatpush1.msra.mxu0 %v908
        %938 = vmatprep.subr.mxu0 0.0
        %939 = vmatpush1.msra.mxu0 %v907
        %940 = vmatprep.subr.mxu0 0.0
        %941 = vmatpush1.msra.mxu0 %v906
        %942 = vmatprep.subr.mxu0 0.0
        %943 = vmatpush1.msra.mxu0 %v905
        %944 = vmatprep.subr.mxu0 0.0
        %945 = vmatpush1.msra.mxu0 %v904
        %946 = vmatprep.subr.mxu0 0.0
        %947 = vmatpush1.msra.mxu0 %v903
        %948 = vmatprep.subr.mxu0 0.0
        %949 = vmatpush1.msra.mxu0 %v902
        %950 = vmatprep.subr.mxu0 0.0
        %951 = vmatpush2.msra.mxu0 0.0
        %952 = vmatprep.subr.mxu0 0.0
        %953 = vmatpush2.msra.mxu0 0.0
        %954 = vmatprep.subr.mxu0 0.0
        %955 = vmatpush2.msra.mxu0 0.0
        %956 = vmatprep.subr.mxu0 0.0
        %957 = vmatpush2.msra.mxu0 0.0
        %958 = vmatprep.subr.mxu0 0.0
        %959 = vmatpush2.msra.mxu0 0.0
        %960 = vmatprep.subr.mxu0 0.0
        %961 = vmatpush2.msra.mxu0 0.0
        %962 = vmatprep.subr.mxu0 0.0
        %963 = vmatpush2.msra.mxu0 0.0
        %964 = vmatprep.subr.mxu0 0.0
        %965 = vmatpush2.msra.mxu0 0.0
        %966 = vmatprep.subr.mxu0 0.0
        %967 = vmatpush2.msra.mxu0 0.0
        %968 = vmatprep.subr.mxu0 0.0
        %969 = vmatpush2.msra.mxu0 0.0
        %970 = vmatprep.subr.mxu0 0.0
        %971 = vmatpush2.msra.mxu0 0.0
        %972 = vmatprep.subr.mxu0 0.0
        %973 = vmatpush2.msra.mxu0 0.0
        %974 = vmatprep.subr.mxu0 0.0
        %975 = vmatpush2.msra.mxu0 0.0
        %976 = vmatprep.subr.mxu0 0.0
        %977 = vmatpush2.msra.mxu0 0.0
        %978 = vmatprep.subr.mxu0 0.0
        %979 = vmatpush2.msra.mxu0 0.0
        %980 = vmatprep.subr.mxu0 0.0
        %981 = vmatpush2.msra.mxu0 0.0
        %982 = vmatprep.mubr.f32.mxu0 0.0
        %983 = vmatmul.mubr.f32.gmra.mxu0 %v893
        %v984 = vpop.f32.mrf.mxu0
        %v985 = vadd.f32 0.0, %v984
        %v986 = vpop.f32.mrf.mxu0
        %987 = vmatprep.mubr.f32.mxu0 0.0
        %988 = vmatmul.mubr.f32.gmra.mxu0 %v894
        %v989 = vpop.f32.mrf.mxu0
        %v990 = vadd.f32 0.0, %v989
        %v991 = vpop.f32.mrf.mxu0
        %992 = vmatprep.mubr.f32.mxu0 0.0
        %993 = vmatmul.mubr.f32.gmra.mxu0 %v895
        %v994 = vpop.f32.mrf.mxu0
        %v995 = vadd.f32 0.0, %v994
        %v996 = vpop.f32.mrf.mxu0
        %997 = vmatprep.mubr.f32.mxu0 0.0
        %998 = vmatmul.mubr.f32.gmra.mxu0 %v896
        %v999 = vpop.f32.mrf.mxu0
        %v1000 = vadd.f32 0.0, %v999
        %v1001 = vpop.f32.mrf.mxu0
        %1002 = vmatprep.mubr.f32.mxu0 0.0
        %1003 = vmatmul.mubr.f32.gmra.mxu0 %v897
        %v1004 = vpop.f32.mrf.mxu0
        %v1005 = vadd.f32 0.0, %v1004
        %v1006 = vpop.f32.mrf.mxu0
        %1007 = vmatprep.mubr.f32.mxu0 0.0
        %1008 = vmatmul.mubr.f32.gmra.mxu0 %v898
        %v1009 = vpop.f32.mrf.mxu0
        %v1010 = vadd.f32 0.0, %v1009
        %v1011 = vpop.f32.mrf.mxu0
        %1012 = vmatprep.mubr.f32.mxu0 0.0
        %1013 = vmatmul.mubr.f32.gmra.mxu0 %v899
        %v1014 = vpop.f32.mrf.mxu0
        %v1015 = vadd.f32 0.0, %v1014
        %v1016 = vpop.f32.mrf.mxu0
        %1017 = vmatprep.mubr.f32.mxu0 0.0
        %1018 = vmatmul.mubr.f32.gmra.mxu0 %v900
        %v1019 = vpop.f32.mrf.mxu0
        %v1020 = vadd.f32 0.0, %v1019
        %v1021 = vpop.f32.mrf.mxu0
        %1022 = vdwg.mxu0
        %v1023 = vadd.f32 %v885, %v985
        %v1024 = vadd.f32 %v886, %v990
        %v1025 = vadd.f32 %v887, %v995
        %v1026 = vadd.f32 %v888, %v1000
        %v1027 = vadd.f32 %v889, %v1005
        %v1028 = vadd.f32 %v890, %v1010
        %v1029 = vadd.f32 %v891, %v1015
        %v1030 = vadd.f32 %v892, %v1020
        %s1031 = scalar_lea.vmem %s215, 32
        %v1032 = vld [vmem:[%s1031] sm:$0xff]
        %v1033 = vld [vmem:[%s1031 + $0x10] sm:$0xff]
        %v1034 = vld [vmem:[%s1031 + $0x20] sm:$0xff]
        %v1035 = vld [vmem:[%s1031 + $0x30] sm:$0xff]
        %v1036 = vld [vmem:[%s1031 + $0x40] sm:$0xff]
        %v1037 = vld [vmem:[%s1031 + $0x50] sm:$0xff]
        %v1038 = vld [vmem:[%s1031 + $0x60] sm:$0xff]
        %v1039 = vld [vmem:[%s1031 + $0x70] sm:$0xff]
        %s1040 = scalar_lea.vmem [#allocation2], 768
        %v1041 = vld [vmem:[%s1040] sm:$0xff]
        %v1042 = vld [vmem:[%s1040 + $0x8] sm:$0xff]
        %v1043 = vld [vmem:[%s1040 + $0x10] sm:$0xff]
        %v1044 = vld [vmem:[%s1040 + $0x18] sm:$0xff]
        %v1045 = vld [vmem:[%s1040 + $0x20] sm:$0xff]
        %v1046 = vld [vmem:[%s1040 + $0x28] sm:$0xff]
        %v1047 = vld [vmem:[%s1040 + $0x30] sm:$0xff]
        %v1048 = vld [vmem:[%s1040 + $0x38] sm:$0xff]
        %v1049 = vld [vmem:[%s1040 + $0x40] sm:$0xff]
        %v1050 = vld [vmem:[%s1040 + $0x48] sm:$0xff]
        %v1051 = vld [vmem:[%s1040 + $0x50] sm:$0xff]
        %v1052 = vld [vmem:[%s1040 + $0x58] sm:$0xff]
        %v1053 = vld [vmem:[%s1040 + $0x60] sm:$0xff]
        %v1054 = vld [vmem:[%s1040 + $0x68] sm:$0xff]
        %v1055 = vld [vmem:[%s1040 + $0x70] sm:$0xff]
        %v1056 = vld [vmem:[%s1040 + $0x78] sm:$0xff]
        %1057 = vmatprep.subr.mxu0 0.0
        %1058 = vmatpush1.msra.mxu0 %v1056
        %1059 = vmatprep.subr.mxu0 0.0
        %1060 = vmatpush1.msra.mxu0 %v1055
        %1061 = vmatprep.subr.mxu0 0.0
        %1062 = vmatpush1.msra.mxu0 %v1054
        %1063 = vmatprep.subr.mxu0 0.0
        %1064 = vmatpush1.msra.mxu0 %v1053
        %1065 = vmatprep.subr.mxu0 0.0
        %1066 = vmatpush1.msra.mxu0 %v1052
        %1067 = vmatprep.subr.mxu0 0.0
        %1068 = vmatpush1.msra.mxu0 %v1051
        %1069 = vmatprep.subr.mxu0 0.0
        %1070 = vmatpush1.msra.mxu0 %v1050
        %1071 = vmatprep.subr.mxu0 0.0
        %1072 = vmatpush1.msra.mxu0 %v1049
        %1073 = vmatprep.subr.mxu0 0.0
        %1074 = vmatpush1.msra.mxu0 %v1048
        %1075 = vmatprep.subr.mxu0 0.0
        %1076 = vmatpush1.msra.mxu0 %v1047
        %1077 = vmatprep.subr.mxu0 0.0
        %1078 = vmatpush1.msra.mxu0 %v1046
        %1079 = vmatprep.subr.mxu0 0.0
        %1080 = vmatpush1.msra.mxu0 %v1045
        %1081 = vmatprep.subr.mxu0 0.0
        %1082 = vmatpush1.msra.mxu0 %v1044
        %1083 = vmatprep.subr.mxu0 0.0
        %1084 = vmatpush1.msra.mxu0 %v1043
        %1085 = vmatprep.subr.mxu0 0.0
        %1086 = vmatpush1.msra.mxu0 %v1042
        %1087 = vmatprep.subr.mxu0 0.0
        %1088 = vmatpush1.msra.mxu0 %v1041
        %1089 = vmatprep.subr.mxu0 0.0
        %1090 = vmatpush2.msra.mxu0 0.0
        %1091 = vmatprep.subr.mxu0 0.0
        %1092 = vmatpush2.msra.mxu0 0.0
        %1093 = vmatprep.subr.mxu0 0.0
        %1094 = vmatpush2.msra.mxu0 0.0
        %1095 = vmatprep.subr.mxu0 0.0
        %1096 = vmatpush2.msra.mxu0 0.0
        %1097 = vmatprep.subr.mxu0 0.0
        %1098 = vmatpush2.msra.mxu0 0.0
        %1099 = vmatprep.subr.mxu0 0.0
        %1100 = vmatpush2.msra.mxu0 0.0
        %1101 = vmatprep.subr.mxu0 0.0
        %1102 = vmatpush2.msra.mxu0 0.0
        %1103 = vmatprep.subr.mxu0 0.0
        %1104 = vmatpush2.msra.mxu0 0.0
        %1105 = vmatprep.subr.mxu0 0.0
        %1106 = vmatpush2.msra.mxu0 0.0
        %1107 = vmatprep.subr.mxu0 0.0
        %1108 = vmatpush2.msra.mxu0 0.0
        %1109 = vmatprep.subr.mxu0 0.0
        %1110 = vmatpush2.msra.mxu0 0.0
        %1111 = vmatprep.subr.mxu0 0.0
        %1112 = vmatpush2.msra.mxu0 0.0
        %1113 = vmatprep.subr.mxu0 0.0
        %1114 = vmatpush2.msra.mxu0 0.0
        %1115 = vmatprep.subr.mxu0 0.0
        %1116 = vmatpush2.msra.mxu0 0.0
        %1117 = vmatprep.subr.mxu0 0.0
        %1118 = vmatpush2.msra.mxu0 0.0
        %1119 = vmatprep.subr.mxu0 0.0
        %1120 = vmatpush2.msra.mxu0 0.0
        %1121 = vmatprep.mubr.f32.mxu0 0.0
        %1122 = vmatmul.mubr.f32.gmra.mxu0 %v1032
        %v1123 = vpop.f32.mrf.mxu0
        %v1124 = vadd.f32 0.0, %v1123
        %v1125 = vpop.f32.mrf.mxu0
        %1126 = vmatprep.mubr.f32.mxu0 0.0
        %1127 = vmatmul.mubr.f32.gmra.mxu0 %v1033
        %v1128 = vpop.f32.mrf.mxu0
        %v1129 = vadd.f32 0.0, %v1128
        %v1130 = vpop.f32.mrf.mxu0
        %1131 = vmatprep.mubr.f32.mxu0 0.0
        %1132 = vmatmul.mubr.f32.gmra.mxu0 %v1034
        %v1133 = vpop.f32.mrf.mxu0
        %v1134 = vadd.f32 0.0, %v1133
        %v1135 = vpop.f32.mrf.mxu0
        %1136 = vmatprep.mubr.f32.mxu0 0.0
        %1137 = vmatmul.mubr.f32.gmra.mxu0 %v1035
        %v1138 = vpop.f32.mrf.mxu0
        %v1139 = vadd.f32 0.0, %v1138
        %v1140 = vpop.f32.mrf.mxu0
        %1141 = vmatprep.mubr.f32.mxu0 0.0
        %1142 = vmatmul.mubr.f32.gmra.mxu0 %v1036
        %v1143 = vpop.f32.mrf.mxu0
        %v1144 = vadd.f32 0.0, %v1143
        %v1145 = vpop.f32.mrf.mxu0
        %1146 = vmatprep.mubr.f32.mxu0 0.0
        %1147 = vmatmul.mubr.f32.gmra.mxu0 %v1037
        %v1148 = vpop.f32.mrf.mxu0
        %v1149 = vadd.f32 0.0, %v1148
        %v1150 = vpop.f32.mrf.mxu0
        %1151 = vmatprep.mubr.f32.mxu0 0.0
        %1152 = vmatmul.mubr.f32.gmra.mxu0 %v1038
        %v1153 = vpop.f32.mrf.mxu0
        %v1154 = vadd.f32 0.0, %v1153
        %v1155 = vpop.f32.mrf.mxu0
        %1156 = vmatprep.mubr.f32.mxu0 0.0
        %1157 = vmatmul.mubr.f32.gmra.mxu0 %v1039
        %v1158 = vpop.f32.mrf.mxu0
        %v1159 = vadd.f32 0.0, %v1158
        %v1160 = vpop.f32.mrf.mxu0
        %1161 = vdwg.mxu0
        %v1162 = vadd.f32 %v1023, %v1124
        %v1163 = vadd.f32 %v1024, %v1129
        %v1164 = vadd.f32 %v1025, %v1134
        %v1165 = vadd.f32 %v1026, %v1139
        %v1166 = vadd.f32 %v1027, %v1144
        %v1167 = vadd.f32 %v1028, %v1149
        %v1168 = vadd.f32 %v1029, %v1154
        %v1169 = vadd.f32 %v1030, %v1159
        %v1170 = vld [vmem:[%s1031 + $0x1] sm:$0xff]
        %v1171 = vld [vmem:[%s1031 + $0x11] sm:$0xff]
        %v1172 = vld [vmem:[%s1031 + $0x21] sm:$0xff]
        %v1173 = vld [vmem:[%s1031 + $0x31] sm:$0xff]
        %v1174 = vld [vmem:[%s1031 + $0x41] sm:$0xff]
        %v1175 = vld [vmem:[%s1031 + $0x51] sm:$0xff]
        %v1176 = vld [vmem:[%s1031 + $0x61] sm:$0xff]
        %v1177 = vld [vmem:[%s1031 + $0x71] sm:$0xff]
        %s1178 = scalar_lea.vmem [#allocation2], 896
        %v1179 = vld [vmem:[%s1178] sm:$0xff]
        %v1180 = vld [vmem:[%s1178 + $0x8] sm:$0xff]
        %v1181 = vld [vmem:[%s1178 + $0x10] sm:$0xff]
        %v1182 = vld [vmem:[%s1178 + $0x18] sm:$0xff]
        %v1183 = vld [vmem:[%s1178 + $0x20] sm:$0xff]
        %v1184 = vld [vmem:[%s1178 + $0x28] sm:$0xff]
        %v1185 = vld [vmem:[%s1178 + $0x30] sm:$0xff]
        %v1186 = vld [vmem:[%s1178 + $0x38] sm:$0xff]
        %v1187 = vld [vmem:[%s1178 + $0x40] sm:$0xff]
        %v1188 = vld [vmem:[%s1178 + $0x48] sm:$0xff]
        %v1189 = vld [vmem:[%s1178 + $0x50] sm:$0xff]
        %v1190 = vld [vmem:[%s1178 + $0x58] sm:$0xff]
        %v1191 = vld [vmem:[%s1178 + $0x60] sm:$0xff]
        %v1192 = vld [vmem:[%s1178 + $0x68] sm:$0xff]
        %v1193 = vld [vmem:[%s1178 + $0x70] sm:$0xff]
        %v1194 = vld [vmem:[%s1178 + $0x78] sm:$0xff]
        %1195 = vmatprep.subr.mxu0 0.0
        %1196 = vmatpush1.msra.mxu0 %v1194
        %1197 = vmatprep.subr.mxu0 0.0
        %1198 = vmatpush1.msra.mxu0 %v1193
        %1199 = vmatprep.subr.mxu0 0.0
        %1200 = vmatpush1.msra.mxu0 %v1192
        %1201 = vmatprep.subr.mxu0 0.0
        %1202 = vmatpush1.msra.mxu0 %v1191
        %1203 = vmatprep.subr.mxu0 0.0
        %1204 = vmatpush1.msra.mxu0 %v1190
        %1205 = vmatprep.subr.mxu0 0.0
        %1206 = vmatpush1.msra.mxu0 %v1189
        %1207 = vmatprep.subr.mxu0 0.0
        %1208 = vmatpush1.msra.mxu0 %v1188
        %1209 = vmatprep.subr.mxu0 0.0
        %1210 = vmatpush1.msra.mxu0 %v1187
        %1211 = vmatprep.subr.mxu0 0.0
        %1212 = vmatpush1.msra.mxu0 %v1186
        %1213 = vmatprep.subr.mxu0 0.0
        %1214 = vmatpush1.msra.mxu0 %v1185
        %1215 = vmatprep.subr.mxu0 0.0
        %1216 = vmatpush1.msra.mxu0 %v1184
        %1217 = vmatprep.subr.mxu0 0.0
        %1218 = vmatpush1.msra.mxu0 %v1183
        %1219 = vmatprep.subr.mxu0 0.0
        %1220 = vmatpush1.msra.mxu0 %v1182
        %1221 = vmatprep.subr.mxu0 0.0
        %1222 = vmatpush1.msra.mxu0 %v1181
        %1223 = vmatprep.subr.mxu0 0.0
        %1224 = vmatpush1.msra.mxu0 %v1180
        %1225 = vmatprep.subr.mxu0 0.0
        %1226 = vmatpush1.msra.mxu0 %v1179
        %1227 = vmatprep.subr.mxu0 0.0
        %1228 = vmatpush2.msra.mxu0 0.0
        %1229 = vmatprep.subr.mxu0 0.0
        %1230 = vmatpush2.msra.mxu0 0.0
        %1231 = vmatprep.subr.mxu0 0.0
        %1232 = vmatpush2.msra.mxu0 0.0
        %1233 = vmatprep.subr.mxu0 0.0
        %1234 = vmatpush2.msra.mxu0 0.0
        %1235 = vmatprep.subr.mxu0 0.0
        %1236 = vmatpush2.msra.mxu0 0.0
        %1237 = vmatprep.subr.mxu0 0.0
        %1238 = vmatpush2.msra.mxu0 0.0
        %1239 = vmatprep.subr.mxu0 0.0
        %1240 = vmatpush2.msra.mxu0 0.0
        %1241 = vmatprep.subr.mxu0 0.0
        %1242 = vmatpush2.msra.mxu0 0.0
        %1243 = vmatprep.subr.mxu0 0.0
        %1244 = vmatpush2.msra.mxu0 0.0
        %1245 = vmatprep.subr.mxu0 0.0
        %1246 = vmatpush2.msra.mxu0 0.0
        %1247 = vmatprep.subr.mxu0 0.0
        %1248 = vmatpush2.msra.mxu0 0.0
        %1249 = vmatprep.subr.mxu0 0.0
        %1250 = vmatpush2.msra.mxu0 0.0
        %1251 = vmatprep.subr.mxu0 0.0
        %1252 = vmatpush2.msra.mxu0 0.0
        %1253 = vmatprep.subr.mxu0 0.0
        %1254 = vmatpush2.msra.mxu0 0.0
        %1255 = vmatprep.subr.mxu0 0.0
        %1256 = vmatpush2.msra.mxu0 0.0
        %1257 = vmatprep.subr.mxu0 0.0
        %1258 = vmatpush2.msra.mxu0 0.0
        %1259 = vmatprep.mubr.f32.mxu0 0.0
        %1260 = vmatmul.mubr.f32.gmra.mxu0 %v1170
        %v1261 = vpop.f32.mrf.mxu0
        %v1262 = vadd.f32 0.0, %v1261
        %v1263 = vpop.f32.mrf.mxu0
        %1264 = vmatprep.mubr.f32.mxu0 0.0
        %1265 = vmatmul.mubr.f32.gmra.mxu0 %v1171
        %v1266 = vpop.f32.mrf.mxu0
        %v1267 = vadd.f32 0.0, %v1266
        %v1268 = vpop.f32.mrf.mxu0
        %1269 = vmatprep.mubr.f32.mxu0 0.0
        %1270 = vmatmul.mubr.f32.gmra.mxu0 %v1172
        %v1271 = vpop.f32.mrf.mxu0
        %v1272 = vadd.f32 0.0, %v1271
        %v1273 = vpop.f32.mrf.mxu0
        %1274 = vmatprep.mubr.f32.mxu0 0.0
        %1275 = vmatmul.mubr.f32.gmra.mxu0 %v1173
        %v1276 = vpop.f32.mrf.mxu0
        %v1277 = vadd.f32 0.0, %v1276
        %v1278 = vpop.f32.mrf.mxu0
        %1279 = vmatprep.mubr.f32.mxu0 0.0
        %1280 = vmatmul.mubr.f32.gmra.mxu0 %v1174
        %v1281 = vpop.f32.mrf.mxu0
        %v1282 = vadd.f32 0.0, %v1281
        %v1283 = vpop.f32.mrf.mxu0
        %1284 = vmatprep.mubr.f32.mxu0 0.0
        %1285 = vmatmul.mubr.f32.gmra.mxu0 %v1175
        %v1286 = vpop.f32.mrf.mxu0
        %v1287 = vadd.f32 0.0, %v1286
        %v1288 = vpop.f32.mrf.mxu0
        %1289 = vmatprep.mubr.f32.mxu0 0.0
        %1290 = vmatmul.mubr.f32.gmra.mxu0 %v1176
        %v1291 = vpop.f32.mrf.mxu0
        %v1292 = vadd.f32 0.0, %v1291
        %v1293 = vpop.f32.mrf.mxu0
        %1294 = vmatprep.mubr.f32.mxu0 0.0
        %1295 = vmatmul.mubr.f32.gmra.mxu0 %v1177
        %v1296 = vpop.f32.mrf.mxu0
        %v1297 = vadd.f32 0.0, %v1296
        %v1298 = vpop.f32.mrf.mxu0
        %1299 = vdwg.mxu0
        %v1300 = vadd.f32 %v1162, %v1262
        %v1301 = vadd.f32 %v1163, %v1267
        %v1302 = vadd.f32 %v1164, %v1272
        %v1303 = vadd.f32 %v1165, %v1277
        %v1304 = vadd.f32 %v1166, %v1282
        %v1305 = vadd.f32 %v1167, %v1287
        %v1306 = vadd.f32 %v1168, %v1292
        %v1307 = vadd.f32 %v1169, %v1297
        %v1308 = vld [vmem:[%s1031 + $0x2] sm:$0xff]
        %v1309 = vld [vmem:[%s1031 + $0x12] sm:$0xff]
        %v1310 = vld [vmem:[%s1031 + $0x22] sm:$0xff]
        %v1311 = vld [vmem:[%s1031 + $0x32] sm:$0xff]
        %v1312 = vld [vmem:[%s1031 + $0x42] sm:$0xff]
        %v1313 = vld [vmem:[%s1031 + $0x52] sm:$0xff]
        %v1314 = vld [vmem:[%s1031 + $0x62] sm:$0xff]
        %v1315 = vld [vmem:[%s1031 + $0x72] sm:$0xff]
        %s1316 = scalar_lea.vmem [#allocation2], 1024
        %v1317 = vld [vmem:[%s1316] sm:$0xff]
        %v1318 = vld [vmem:[%s1316 + $0x8] sm:$0xff]
        %v1319 = vld [vmem:[%s1316 + $0x10] sm:$0xff]
        %v1320 = vld [vmem:[%s1316 + $0x18] sm:$0xff]
        %v1321 = vld [vmem:[%s1316 + $0x20] sm:$0xff]
        %v1322 = vld [vmem:[%s1316 + $0x28] sm:$0xff]
        %v1323 = vld [vmem:[%s1316 + $0x30] sm:$0xff]
        %v1324 = vld [vmem:[%s1316 + $0x38] sm:$0xff]
        %v1325 = vld [vmem:[%s1316 + $0x40] sm:$0xff]
        %v1326 = vld [vmem:[%s1316 + $0x48] sm:$0xff]
        %v1327 = vld [vmem:[%s1316 + $0x50] sm:$0xff]
        %v1328 = vld [vmem:[%s1316 + $0x58] sm:$0xff]
        %v1329 = vld [vmem:[%s1316 + $0x60] sm:$0xff]
        %v1330 = vld [vmem:[%s1316 + $0x68] sm:$0xff]
        %v1331 = vld [vmem:[%s1316 + $0x70] sm:$0xff]
        %v1332 = vld [vmem:[%s1316 + $0x78] sm:$0xff]
        %1333 = vmatprep.subr.mxu0 0.0
        %1334 = vmatpush1.msra.mxu0 %v1332
        %1335 = vmatprep.subr.mxu0 0.0
        %1336 = vmatpush1.msra.mxu0 %v1331
        %1337 = vmatprep.subr.mxu0 0.0
        %1338 = vmatpush1.msra.mxu0 %v1330
        %1339 = vmatprep.subr.mxu0 0.0
        %1340 = vmatpush1.msra.mxu0 %v1329
        %1341 = vmatprep.subr.mxu0 0.0
        %1342 = vmatpush1.msra.mxu0 %v1328
        %1343 = vmatprep.subr.mxu0 0.0
        %1344 = vmatpush1.msra.mxu0 %v1327
        %1345 = vmatprep.subr.mxu0 0.0
        %1346 = vmatpush1.msra.mxu0 %v1326
        %1347 = vmatprep.subr.mxu0 0.0
        %1348 = vmatpush1.msra.mxu0 %v1325
        %1349 = vmatprep.subr.mxu0 0.0
        %1350 = vmatpush1.msra.mxu0 %v1324
        %1351 = vmatprep.subr.mxu0 0.0
        %1352 = vmatpush1.msra.mxu0 %v1323
        %1353 = vmatprep.subr.mxu0 0.0
        %1354 = vmatpush1.msra.mxu0 %v1322
        %1355 = vmatprep.subr.mxu0 0.0
        %1356 = vmatpush1.msra.mxu0 %v1321
        %1357 = vmatprep.subr.mxu0 0.0
        %1358 = vmatpush1.msra.mxu0 %v1320
        %1359 = vmatprep.subr.mxu0 0.0
        %1360 = vmatpush1.msra.mxu0 %v1319
        %1361 = vmatprep.subr.mxu0 0.0
        %1362 = vmatpush1.msra.mxu0 %v1318
        %1363 = vmatprep.subr.mxu0 0.0
        %1364 = vmatpush1.msra.mxu0 %v1317
        %1365 = vmatprep.subr.mxu0 0.0
        %1366 = vmatpush2.msra.mxu0 0.0
        %1367 = vmatprep.subr.mxu0 0.0
        %1368 = vmatpush2.msra.mxu0 0.0
        %1369 = vmatprep.subr.mxu0 0.0
        %1370 = vmatpush2.msra.mxu0 0.0
        %1371 = vmatprep.subr.mxu0 0.0
        %1372 = vmatpush2.msra.mxu0 0.0
        %1373 = vmatprep.subr.mxu0 0.0
        %1374 = vmatpush2.msra.mxu0 0.0
        %1375 = vmatprep.subr.mxu0 0.0
        %1376 = vmatpush2.msra.mxu0 0.0
        %1377 = vmatprep.subr.mxu0 0.0
        %1378 = vmatpush2.msra.mxu0 0.0
        %1379 = vmatprep.subr.mxu0 0.0
        %1380 = vmatpush2.msra.mxu0 0.0
        %1381 = vmatprep.subr.mxu0 0.0
        %1382 = vmatpush2.msra.mxu0 0.0
        %1383 = vmatprep.subr.mxu0 0.0
        %1384 = vmatpush2.msra.mxu0 0.0
        %1385 = vmatprep.subr.mxu0 0.0
        %1386 = vmatpush2.msra.mxu0 0.0
        %1387 = vmatprep.subr.mxu0 0.0
        %1388 = vmatpush2.msra.mxu0 0.0
        %1389 = vmatprep.subr.mxu0 0.0
        %1390 = vmatpush2.msra.mxu0 0.0
        %1391 = vmatprep.subr.mxu0 0.0
        %1392 = vmatpush2.msra.mxu0 0.0
        %1393 = vmatprep.subr.mxu0 0.0
        %1394 = vmatpush2.msra.mxu0 0.0
        %1395 = vmatprep.subr.mxu0 0.0
        %1396 = vmatpush2.msra.mxu0 0.0
        %1397 = vmatprep.mubr.f32.mxu0 0.0
        %1398 = vmatmul.mubr.f32.gmra.mxu0 %v1308
        %v1399 = vpop.f32.mrf.mxu0
        %v1400 = vadd.f32 0.0, %v1399
        %v1401 = vpop.f32.mrf.mxu0
        %1402 = vmatprep.mubr.f32.mxu0 0.0
        %1403 = vmatmul.mubr.f32.gmra.mxu0 %v1309
        %v1404 = vpop.f32.mrf.mxu0
        %v1405 = vadd.f32 0.0, %v1404
        %v1406 = vpop.f32.mrf.mxu0
        %1407 = vmatprep.mubr.f32.mxu0 0.0
        %1408 = vmatmul.mubr.f32.gmra.mxu0 %v1310
        %v1409 = vpop.f32.mrf.mxu0
        %v1410 = vadd.f32 0.0, %v1409
        %v1411 = vpop.f32.mrf.mxu0
        %1412 = vmatprep.mubr.f32.mxu0 0.0
        %1413 = vmatmul.mubr.f32.gmra.mxu0 %v1311
        %v1414 = vpop.f32.mrf.mxu0
        %v1415 = vadd.f32 0.0, %v1414
        %v1416 = vpop.f32.mrf.mxu0
        %1417 = vmatprep.mubr.f32.mxu0 0.0
        %1418 = vmatmul.mubr.f32.gmra.mxu0 %v1312
        %v1419 = vpop.f32.mrf.mxu0
        %v1420 = vadd.f32 0.0, %v1419
        %v1421 = vpop.f32.mrf.mxu0
        %1422 = vmatprep.mubr.f32.mxu0 0.0
        %1423 = vmatmul.mubr.f32.gmra.mxu0 %v1313
        %v1424 = vpop.f32.mrf.mxu0
        %v1425 = vadd.f32 0.0, %v1424
        %v1426 = vpop.f32.mrf.mxu0
        %1427 = vmatprep.mubr.f32.mxu0 0.0
        %1428 = vmatmul.mubr.f32.gmra.mxu0 %v1314
        %v1429 = vpop.f32.mrf.mxu0
        %v1430 = vadd.f32 0.0, %v1429
        %v1431 = vpop.f32.mrf.mxu0
        %1432 = vmatprep.mubr.f32.mxu0 0.0
        %1433 = vmatmul.mubr.f32.gmra.mxu0 %v1315
        %v1434 = vpop.f32.mrf.mxu0
        %v1435 = vadd.f32 0.0, %v1434
        %v1436 = vpop.f32.mrf.mxu0
        %1437 = vdwg.mxu0
        %v1438 = vadd.f32 %v1300, %v1400
        %v1439 = vadd.f32 %v1301, %v1405
        %v1440 = vadd.f32 %v1302, %v1410
        %v1441 = vadd.f32 %v1303, %v1415
        %v1442 = vadd.f32 %v1304, %v1420
        %v1443 = vadd.f32 %v1305, %v1425
        %v1444 = vadd.f32 %v1306, %v1430
        %v1445 = vadd.f32 %v1307, %v1435
        %v1446 = vld [vmem:[%s218] sm:$0x1]
        %v1448 = vlaneseq
        %v1449 = vshrl.u32 %v1448, 7
        %v1450 = vsub.s32 0, %v1449
        %v1451 = vrot.slane %v1446, %v1450
        %v1453 = vadd.f32 %v1438, %v1451
        %v1454 = vadd.f32 %v1439, %v1451
        %v1455 = vadd.f32 %v1440, %v1451
        %v1456 = vadd.f32 %v1441, %v1451
        %v1457 = vadd.f32 %v1442, %v1451
        %v1458 = vadd.f32 %v1443, %v1451
        %v1459 = vadd.f32 %v1444, %v1451
        %v1460 = vadd.f32 %v1445, %v1451
        %1461 = vst [vmem:[%s210] sm:$0xff] %v1453
        %1462 = vst [vmem:[%s210 + $0x8] sm:$0xff] %v1454
        %1463 = vst [vmem:[%s210 + $0x10] sm:$0xff] %v1455
        %1464 = vst [vmem:[%s210 + $0x18] sm:$0xff] %v1456
        %1465 = vst [vmem:[%s210 + $0x20] sm:$0xff] %v1457
        %1466 = vst [vmem:[%s210 + $0x28] sm:$0xff] %v1458
        %1467 = vst [vmem:[%s210 + $0x30] sm:$0xff] %v1459
        %1468 = vst [vmem:[%s210 + $0x38] sm:$0xff] %v1460
        %s1469 = sand.u32 %s118, 1
        %s1470 = scalar_lea.sflag [#allocation4], %s1469
        %s1471 = sand.u32 %s118, 1
        %s1472 = smul.addr %s1471, 64
        %s1473 = scalar_lea.vmem [#allocation5], %s1472
        // Predicated region
        $region37: #{tpu_custom_call.1} parent=31 // pred_check
          %p1474 = pneg %p128
        $region38: #{tpu_custom_call.1} parent=31 // pred_check_branch
          %1476 = sbr.rel (%p1474) target = $region40
        $region39: #{tpu_custom_call.1} parent=31 // pred_region
          %s1478 = ssub.s32 1024, 1024
          %1479 = vsyncadd %s1470, %s1478
          %s1480 = smul.addr %s22, 8
          %s1481 = sadd.s32 %s23, %s1480
          %s1482 = smul.addr %s1481, 128
          %s1483 = scalar_lea.hbm %s3, %s1482
          %s1484 = sshll.u32 %s1473, 4
          %s1485 = int_to_ptr.vmem [resolvable:$true] %s1484
          %1490 = dma.vmem_to_hbm [thread:$0]  %s1485, 1024, %s1483, %s1470, 128, 128, 8
        $region40: #{tpu_custom_call.1} parent=31 // pred_fallthru
          _
      $region32: #{tpu_custom_call.1} parent=5 // pred_fallthru
        _
      %p1491 = scmp.le.s32.totalorder 2, %s13
      // Predicated region
      $region41: #{tpu_custom_call.1} parent=5 // pred_check
        %p1492 = pneg %p1491
      $region42: #{tpu_custom_call.1} parent=5 // pred_check_branch
        %1494 = sbr.rel (%p1492) target = $region44
      $region43: #{tpu_custom_call.1} parent=5 // pred_region
        %s1495 = ssub.s32 %s13, 2
        // Predicated region
        $region45: #{tpu_custom_call.1} parent=43 // pred_check
          %p1496 = pneg %p134
        $region46: #{tpu_custom_call.1} parent=43 // pred_check_branch
          %1498 = sbr.rel (%p1496) target = $region48
        $region47: #{tpu_custom_call.1} parent=43 // pred_region
          %s1499 = sand.u32 %s119, 1
          %s1500 = scalar_lea.sflag [#allocation4], %s1499
          %s1501 = sand.u32 %s119, 1
          %s1502 = smul.addr %s1501, 64
          %s1503 = scalar_lea.vmem [#allocation5], %s1502
          %1504 = dma.done %s1500, 1024
        $region48: #{tpu_custom_call.1} parent=43 // pred_fallthru
          _
      $region44: #{tpu_custom_call.1} parent=5 // pred_fallthru
        _
    $region6: #{tpu_custom_call.1} parent=1 // loop_footer
      %s17 = sadd.s32 1, %s13
    $region7: #{tpu_custom_call.1} parent=1 // loop_footer_branch
      %12 = sbr.rel target = $region3
    $region8: #{tpu_custom_call.1} parent=1 // loop_exit
      _
    %1505 = vsyncpa [#allocation3], 1
    %s1506 = scalar_lea.sflag [#allocation3], 1
    %1507 = vsyncpa %s1506, 1
    %1508 = vsyncpa [#allocation4], 1
    %s1509 = scalar_lea.sflag [#allocation4], 1
    %1510 = vsyncpa %s1509, 1

</llo_original>
